<compile_context>
chip_gen: v6e
topology: v6e:2x2x1
jax: 0.10.0
libtpu: 0.0.40
codegen_flags: <defaults>
</compile_context>

<pallas_src>
import functools
import math

import jax
import jax.numpy as jnp
from jax.experimental import pallas as pl
from jax.experimental.pallas import tpu as pltpu

LOG2 = math.log(2.0)


def _ssp(x):
    # shifted softplus: log(1 + exp(x)) - log(2), numerically stable form
    return jnp.maximum(x, 0.0) + jnp.log(1.0 + jnp.exp(-jnp.abs(x))) - LOG2


def _row_tile(n, cap):
    """Largest multiple-of-8 divisor of n that is <= cap (else n itself = full dim)."""
    t = min(cap, n)
    t -= t % 8
    while t >= 8:
        if n % t == 0:
            return t
        t -= 8
    return n


def _tpu_vmem_bytes():
    try:
        return int(pltpu.get_tpu_info().vmem_capacity_bytes)
    except Exception:
        return 64 << 20  # conservative fallback (v7x per-TensorCore VMEM)


# ----------------------------------------------------------------------------
# Gaussian RBF precompute kernel (run once per forward, shared by all layers).
# dist is read as lane-dense 2-D row tiles; the output is stored in bf16 to
# halve the per-layer HBM read of the (N, N, G_pad) tensor.
# ----------------------------------------------------------------------------
def _rbf_kernel(coeff, dist_ref, off_ref, out_ref):
    d = dist_ref[...]                               # (tile_r, N)
    off = off_ref[...]                              # (1, G_pad)
    diff = d[:, :, None] - off[None, :, :]          # (tile_r, N, G_pad)
    out_ref[...] = jnp.exp(coeff * diff * diff).astype(out_ref.dtype)


def gaussian_rbf(dist, off_pad, coeff, *, out_dtype=jnp.bfloat16,
                 vmem_limit_bytes=None):
    N = dist.shape[0]
    G = off_pad.shape[0]
    # Keep each (tile_r, N, G) block modest; never fall back to the whole tensor.
    budget_rows = max(8, (2 << 20) // max(1, N * G * 2))
    tile_r = _row_tile(N, min(64, budget_rows))
    assert N % tile_r == 0
    return pl.pallas_call(
        functools.partial(_rbf_kernel, coeff),
        out_shape=jax.ShapeDtypeStruct((N, N, G), out_dtype),
        grid=(N // tile_r,),
        in_specs=[
            pl.BlockSpec((tile_r, N), lambda i: (i, 0)),
            pl.BlockSpec((1, G), lambda i: (0, 0)),
        ],
        out_specs=pl.BlockSpec((tile_r, N, G), lambda i: (i, 0, 0)),
        compiler_params=pltpu.CompilerParams(
            dimension_semantics=("parallel",),
            vmem_limit_bytes=vmem_limit_bytes),
    )(dist, off_pad.reshape(1, G))


# ----------------------------------------------------------------------------
# Node-wise linear kernel (hoisted v @ wlin, run once per layer)
# ----------------------------------------------------------------------------
def _linear_kernel(x_ref, w_ref, o_ref):
    o_ref[...] = jnp.dot(x_ref[...], w_ref[...], preferred_element_type=jnp.float32)


def node_linear(x, w, *, tile_rows=None):
    N, H = x.shape
    F = w.shape[1]
    if tile_rows is None:
        tile_rows = _row_tile(N, 256)
    assert N % tile_rows == 0
    return pl.pallas_call(
        _linear_kernel,
        out_shape=jax.ShapeDtypeStruct((N, F), jnp.float32),
        grid=(N // tile_rows,),
        in_specs=[
            pl.BlockSpec((tile_rows, H), lambda i: (i, 0)),
            pl.BlockSpec((H, F), lambda i: (0, 0)),
        ],
        out_specs=pl.BlockSpec((tile_rows, F), lambda i: (i, 0)),
        compiler_params=pltpu.CompilerParams(dimension_semantics=("parallel",)),
    )(x, w)


# ----------------------------------------------------------------------------
# Interaction block kernel (update_e + update_v of SchNet)
#   grid = (target tiles ["parallel"], source chunks ["arbitrary"])
# ----------------------------------------------------------------------------
def _interaction_kernel(v_res_ref, rbf_ref, wenv_ref, vl_ref,
                        w1_ref, b1_ref, w2_ref, b2_ref,
                        wv1_ref, bv1_ref, wv2_ref, bv2_ref,
                        out_ref, acc_ref):
    si = pl.program_id(1)

    @pl.when(si == 0)
    def _():
        acc_ref[...] = jnp.zeros_like(acc_ref)

    rbf = rbf_ref[...]                                   # (tn, sc, G_pad) bf16
    tn, sc, g = rbf.shape

    # filter-generating MLP (update_e) on the flattened edge block; the first
    # matmul is bf16 x bf16 on the MXU (rbf and padded w1 stored in bf16).
    rbf2 = rbf.reshape(tn * sc, g)
    h = _ssp(jnp.dot(rbf2, w1_ref[...], preferred_element_type=jnp.float32)
             + b1_ref[...])
    filt = jnp.dot(h, w2_ref[...], preferred_element_type=jnp.float32) + b2_ref[...]
    F = filt.shape[-1]

    # cosine-cutoff / graph mask (lane-dense 2-D block, broadcast in-kernel) and
    # weighted message aggregation over this source chunk (one sublane reduce).
    filt3 = filt.reshape(tn, sc, F) * wenv_ref[...][:, :, None]
    acc_ref[...] += jnp.sum(filt3 * vl_ref[...][None, :, :], axis=1)

    # node update MLP + residual (update_v) once all source chunks are summed
    @pl.when(si == pl.num_programs(1) - 1)
    def _():
        msg = acc_ref[...]                               # (tn, F) f32
        h2 = _ssp(jnp.dot(msg, wv1_ref[...], preferred_element_type=jnp.float32)
                  + bv1_ref[...])
        out_ref[...] = (v_res_ref[...]
                        + jnp.dot(h2, wv2_ref[...], preferred_element_type=jnp.float32)
                        + bv2_ref[...])


def interaction_layer(v, vl, rbf, wenv, w1p, p, *, tile_n, src_chunk,
                      vmem_limit_bytes=None):
    N, H = v.shape
    F = vl.shape[1]
    G = rbf.shape[-1]
    assert N % tile_n == 0 and N % src_chunk == 0
    assert tile_n % 8 == 0 or tile_n == N
    assert src_chunk % 128 == 0 or src_chunk == N
    assert rbf.shape == (N, N, G) and wenv.shape == (N, N)

    grid = (N // tile_n, N // src_chunk)

    def full(shape):
        return pl.BlockSpec(shape, lambda t, s: (0, 0))

    in_specs = [
        pl.BlockSpec((tile_n, H), lambda t, s: (t, 0)),                # v rows (residual)
        pl.BlockSpec((tile_n, src_chunk, G), lambda t, s: (t, s, 0)),  # precomputed RBF (bf16)
        pl.BlockSpec((tile_n, src_chunk), lambda t, s: (t, s)),        # mask * cutoff env (2-D)
        pl.BlockSpec((src_chunk, F), lambda t, s: (s, 0)),             # hoisted v @ wlin
        full((G, F)), full((1, F)), full((F, F)), full((1, F)),        # filter MLP
        full((F, H)), full((1, H)), full((H, H)), full((1, H)),        # update_v MLP
    ]
    out_specs = pl.BlockSpec((tile_n, H), lambda t, s: (t, 0))

    # TODO(synk): constant weight operands could be single-buffered via
    # pipeline_mode=pl.Buffered(1) for a little extra VMEM headroom.
    return pl.pallas_call(
        _interaction_kernel,
        out_shape=jax.ShapeDtypeStruct((N, H), jnp.float32),
        grid=grid,
        in_specs=in_specs,
        out_specs=out_specs,
        scratch_shapes=[pltpu.VMEM((tile_n, F), jnp.float32)],
        input_output_aliases={0: 0},   # residual update writes back in place
        compiler_params=pltpu.CompilerParams(
            dimension_semantics=("parallel", "arbitrary"),
            vmem_limit_bytes=vmem_limit_bytes),
    )(v, rbf, wenv, vl,
      w1p, p["b1"], p["w2"], p["b2"],
      p["wv1"], p["bv1"], p["wv2"], p["bv2"])


# ----------------------------------------------------------------------------
# Readout kernel (update_u): node MLP + per-graph sum pooling, blocked over
# atom tiles with an accumulating (B, O) output.
# ----------------------------------------------------------------------------
def _readout_kernel(v_ref, poolT_ref, wu1_ref, bu1_ref, wu2_ref, bu2_ref, out_ref):
    @pl.when(pl.program_id(0) == 0)
    def _():
        out_ref[...] = jnp.zeros_like(out_ref)

    h = _ssp(jnp.dot(v_ref[...], wu1_ref[...], preferred_element_type=jnp.float32)
             + bu1_ref[...])
    y = jnp.dot(h, wu2_ref[...], preferred_element_type=jnp.float32) + bu2_ref[...]
    # pooled += poolT.T @ y  (contract over the atom/sublane dim)
    out_ref[...] += jax.lax.dot_general(
        poolT_ref[...], y, (((0,), (0,)), ((), ())),
        preferred_element_type=jnp.float32)


def readout(v, poolT, p, *, tile_n=None):
    N, H = v.shape
    B = poolT.shape[1]
    Hh = p["wu1"].shape[1]
    O = p["wu2"].shape[1]
    if tile_n is None:
        tile_n = _row_tile(N, 256)
    assert N % tile_n == 0

    def full(shape):
        return pl.BlockSpec(shape, lambda t: (0, 0))

    # TODO(synk): O=32 output lanes mean masked partial stores on the (B, O)
    # accumulator; padding O toward 128 is a possible secondary optimization.
    return pl.pallas_call(
        _readout_kernel,
        out_shape=jax.ShapeDtypeStruct((B, O), jnp.float32),
        grid=(N // tile_n,),
        in_specs=[
            pl.BlockSpec((tile_n, H), lambda t: (t, 0)),
            pl.BlockSpec((tile_n, B), lambda t: (t, 0)),
            full((H, Hh)), full((1, Hh)), full((Hh, O)), full((1, O)),
        ],
        out_specs=pl.BlockSpec((B, O), lambda t: (0, 0)),
        compiler_params=pltpu.CompilerParams(dimension_semantics=("arbitrary",)),
    )(v, poolT, p["wu1"], p["bu1"], p["wu2"], p["bu2"])


# ----------------------------------------------------------------------------
# Glue: graph construction + full forward
# ----------------------------------------------------------------------------
def _graph_features(pos, batch_ids, *, cutoff, num_gaussians):
    # TODO(synk): radius_graph produces a dynamic edge list; replaced here by a
    # dense masked all-pairs formulation (identical semantics: masked pairs = 0).
    N = pos.shape[0]
    diff = pos[:, None, :] - pos[None, :, :]
    dist = jnp.sqrt(jnp.sum(diff * diff, axis=-1))                      # (N, N)
    same_graph = batch_ids[:, None] == batch_ids[None, :]
    not_self = ~jnp.eye(N, dtype=bool)
    mask = (same_graph & not_self & (dist < cutoff)).astype(jnp.float32)
    env = 0.5 * (jnp.cos(dist * (jnp.pi / cutoff)) + 1.0)
    wenv = mask * env
    offsets = jnp.linspace(0.0, cutoff, num_gaussians).astype(jnp.float32)
    delta = cutoff / (num_gaussians - 1)
    coeff = -0.5 / (delta * delta)
    return dist, wenv, offsets, coeff


def schnet_forward(z, pos, batch_ids, params, *, cutoff, num_gaussians,
                   num_graphs, tile_n=None, src_chunk=None):
    # Pad atom count to a multiple of 8 so row / sublane tiles always divide.
    # Padded atoms live in a dummy graph (id == num_graphs): they never message
    # real atoms and contribute nothing to the pooled readout.
    # TODO(synk): for large N, also pad to a multiple of 128 so the source axis
    # can always be chunked at 128 rather than falling back to full-N chunks.
    N0 = z.shape[0]
    N = ((N0 + 7) // 8) * 8
    if N != N0:
        pad = N - N0
        z = jnp.concatenate([z, jnp.zeros((pad,), z.dtype)])
        pos = jnp.concatenate([pos, jnp.zeros((pad, 3), pos.dtype)])
        batch_ids = jnp.concatenate(
            [batch_ids, jnp.full((pad,), num_graphs, batch_ids.dtype)])

    # Generation-aware tile sizing: v7x has 64 MiB VMEM per TensorCore -> 64-row
    # target tiles; v5e/v6e (128 MiB physical) take 128-row tiles, with the
    # scoped VMEM limit raised above the 16/32 MiB defaults.
    vmem_bytes = _tpu_vmem_bytes()
    tile_cap = 128 if vmem_bytes >= (128 << 20) else 64
    vmem_limit = min(int(vmem_bytes * 3 // 4), 100 << 20)
    if tile_n is None:
        tile_n = _row_tile(N, tile_cap)
    if src_chunk is None:
        src_chunk = 128 if N % 128 == 0 else N

    dist, wenv, offsets, coeff = _graph_features(
        pos, batch_ids, cutoff=cutoff, num_gaussians=num_gaussians)

    # Pad the Gaussian axis to a lane-dense 128; padded w1 rows are zero so the
    # (unmasked) padded RBF lanes contribute nothing.
    G = num_gaussians
    G_pad = ((G + 127) // 128) * 128
    off_pad = jnp.zeros((G_pad,), jnp.float32).at[:G].set(offsets)

    # RBF computed ONCE per forward (EUP exp hoisted out of the layer loop) and
    # stored in bf16 to halve the dominant per-layer HBM stream.
    rbf = gaussian_rbf(dist, off_pad, coeff, vmem_limit_bytes=vmem_limit)

    v = params["embedding"][z]                       # atom-type embedding (glue)
    for lp in params["layers"]:
        F = lp["w1"].shape[1]
        w1p = (jnp.zeros((G_pad, F), jnp.float32).at[:G].set(lp["w1"])
               .astype(jnp.bfloat16))
        vl = node_linear(v, lp["wlin"])              # hoisted v @ wlin
        v = interaction_layer(v, vl, rbf, wenv, w1p, lp, tile_n=tile_n,
                              src_chunk=src_chunk, vmem_limit_bytes=vmem_limit)

    poolT = (batch_ids[:, None] == jnp.arange(num_graphs)[None, :]).astype(jnp.float32)
    return readout(v, poolT, params["readout"])


def reference_forward(z, pos, batch_ids, params, *, cutoff, num_gaussians, num_graphs):
    # pure-JAX reference with identical math (dense masked all-pairs, f32)
    dist, wenv, offsets, coeff = _graph_features(
        pos, batch_ids, cutoff=cutoff, num_gaussians=num_gaussians)
    rbf = jnp.exp(coeff * (dist[:, :, None] - offsets[None, None, :]) ** 2)  # (N,N,G)
    v = params["embedding"][z]
    for lp in params["layers"]:
        h = _ssp(rbf @ lp["w1"] + lp["b1"])
        filt = (h @ lp["w2"] + lp["b2"]) * wenv[:, :, None]
        vl = v @ lp["wlin"]
        msg = jnp.einsum("tsf,sf->tf", filt, vl)
        v = v + _ssp(msg @ lp["wv1"] + lp["bv1"]) @ lp["wv2"] + lp["bv2"]
    r = params["readout"]
    y = _ssp(v @ r["wu1"] + r["bu1"]) @ r["wu2"] + r["bu2"]
    pool = (jnp.arange(num_graphs)[:, None] == batch_ids[None, :]).astype(jnp.float32)
    return pool @ y


# ----------------------------------------------------------------------------
# Deterministic parameter init (shapes follow SchNet __init__)
# ----------------------------------------------------------------------------
def init_params(key, *, hidden, num_filters, num_gaussians, out_channels,
                num_layers, num_embeddings=100):
    def dense(k, fan_in, fan_out):
        return (0.5 / jnp.sqrt(fan_in)) * jax.random.normal(k, (fan_in, fan_out), jnp.float32)

    def bias(k, n):
        return 0.05 * jax.random.normal(k, (1, n), jnp.float32)

    keys = jax.random.split(key, 2 + num_layers)
    params = {"embedding": 0.1 * jax.random.normal(keys[0], (num_embeddings, hidden), jnp.float32)}
    layers = []
    for i in range(num_layers):
        k = jax.random.split(keys[1 + i], 10)
        layers.append({
            "wlin": dense(k[0], hidden, num_filters),
            "w1": dense(k[1], num_gaussians, num_filters),
            "b1": bias(k[2], num_filters),
            "w2": dense(k[3], num_filters, num_filters),
            "b2": bias(k[4], num_filters),
            "wv1": dense(k[5], num_filters, hidden),
            "bv1": bias(k[6], hidden),
            "wv2": dense(k[7], hidden, hidden),
            "bv2": bias(k[8], hidden),
        })
    params["layers"] = layers
    kr = jax.random.split(keys[1 + num_layers], 4)
    params["readout"] = {
        "wu1": dense(kr[0], hidden, hidden // 2),
        "bu1": bias(kr[1], hidden // 2),
        "wu2": dense(kr[2], hidden // 2, out_channels),
        "bu2": bias(kr[3], out_channels),
    }
    return params


if __name__ == "__main__":
    NUM_GRAPHS, N_PER_GRAPH = 2, 8
    N = NUM_GRAPHS * N_PER_GRAPH
    # Module-default feature widths (MXU-friendly), small graph / few layers.
    HIDDEN, FILTERS, GAUSS, OUT, LAYERS = 128, 128, 50, 32, 3
    CUTOFF = 10.0

    key = jax.random.PRNGKey(0)
    kz, kp, kw = jax.random.split(key, 3)
    z = jax.random.randint(kz, (N,), 1, 10)                        # atomic numbers
    pos = jax.random.uniform(kp, (N, 3), jnp.float32, 0.0, 12.0)   # 3D coordinates
    batch_ids = jnp.repeat(jnp.arange(NUM_GRAPHS, dtype=jnp.int32), N_PER_GRAPH)

    params = init_params(kw, hidden=HIDDEN, num_filters=FILTERS, num_gaussians=GAUSS,
                         out_channels=OUT, num_layers=LAYERS)

    fwd = jax.jit(functools.partial(
        schnet_forward, cutoff=CUTOFF, num_gaussians=GAUSS, num_graphs=NUM_GRAPHS))
    u = jax.block_until_ready(fwd(z, pos, batch_ids, params))

    u_ref = reference_forward(z, pos, batch_ids, params, cutoff=CUTOFF,
                              num_gaussians=GAUSS, num_graphs=NUM_GRAPHS)

    assert u.shape == (NUM_GRAPHS, OUT)
    assert bool(jnp.all(jnp.isfinite(u)))
    # bf16 RBF storage -> slightly looser tolerance vs the pure-f32 reference.
    if not bool(jnp.allclose(u, u_ref, rtol=3e-2, atol=3e-2)):
        raise AssertionError("Pallas output mismatch vs JAX reference")

    print("KERNEL_OK")
</pallas_src>

<mosaic_0001>
module attributes {stable_mosaic.version = 11 : i64} {
  func.func @_rbf_kernel(%arg0: i32, %arg1: memref<16x16xf32, #tpu.memory_space<vmem>>, %arg2: memref<1x128xf32, #tpu.memory_space<vmem>>, %arg3: memref<16x16x128xbf16, #tpu.memory_space<vmem>>) attributes {dimension_semantics = [#tpu.dimension_semantics<parallel>], iteration_bounds = array<i64: 1>, scalar_prefetch = 0 : i64, scratch_operands = 0 : i64, tpu.core_type = #tpu.core_type<tc>, window_params = [{transform_indices = @transform_0, window_bounds = array<i64: 16, 16>}, {pipeline_mode = #tpu.pipeline_mode<synchronous>, transform_indices = @transform_1, window_bounds = array<i64: 1, 128>}, {transform_indices = @transform_2, window_bounds = array<i64: 16, 16, 128>}]} {
    %c0 = arith.constant 0 : index
    %c0_0 = arith.constant 0 : index
    %0 = vector.load %arg1[%c0, %c0_0] : memref<16x16xf32, #tpu.memory_space<vmem>>, vector<16x16xf32>
    %c0_1 = arith.constant 0 : index
    %c0_2 = arith.constant 0 : index
    %1 = vector.load %arg2[%c0_1, %c0_2] : memref<1x128xf32, #tpu.memory_space<vmem>>, vector<1x128xf32>
    %2 = vector.shape_cast %0 : vector<16x16xf32> to vector<16x16x1xf32>
    %3 = vector.shape_cast %1 : vector<1x128xf32> to vector<1x1x128xf32>
    %4 = vector.broadcast %2 : vector<16x16x1xf32> to vector<16x16x128xf32>
    %5 = vector.broadcast %3 : vector<1x1x128xf32> to vector<16x16x128xf32>
    %6 = arith.subf %4, %5 : vector<16x16x128xf32>
    %cst = arith.constant -1.200500e+01 : f32
    %7 = vector.broadcast %cst : f32 to vector<16x16x128xf32>
    %8 = arith.mulf %7, %6 : vector<16x16x128xf32>
    %9 = arith.mulf %8, %6 : vector<16x16x128xf32>
    %10 = math.exp %9 : vector<16x16x128xf32>
    %11 = arith.truncf %10 : vector<16x16x128xf32> to vector<16x16x128xbf16>
    %c0_3 = arith.constant 0 : index
    %c0_4 = arith.constant 0 : index
    %c0_5 = arith.constant 0 : index
    %12 = vector.load %arg3[%c0_3, %c0_4, %c0_5] : memref<16x16x128xbf16, #tpu.memory_space<vmem>>, vector<16x16x128xbf16>
    tpu.vector_store %arg3[%c0_3, %c0_4, %c0_5], %11 {strides = array<i32>} : memref<16x16x128xbf16, #tpu.memory_space<vmem>>, vector<16x16x128xbf16>,
    return
  }
  func.func @transform_0(%arg0: i32) -> (i32, i32) {
    %c0_i32 = arith.constant 0 : i32
    %c0_i32_0 = arith.constant 0 : i32
    return %arg0, %c0_i32 : i32, i32
  }
  func.func @transform_1(%arg0: i32) -> (i32, i32) {
    %c0_i32 = arith.constant 0 : i32
    %c0_i32_0 = arith.constant 0 : i32
    %c0_i32_1 = arith.constant 0 : i32
    return %c0_i32, %c0_i32_0 : i32, i32
  }
  func.func @transform_2(%arg0: i32) -> (i32, i32, i32) {
    %c0_i32 = arith.constant 0 : i32
    %c0_i32_0 = arith.constant 0 : i32
    %c0_i32_1 = arith.constant 0 : i32
    return %arg0, %c0_i32, %c0_i32_0 : i32, i32, i32
  }
}

module attributes {stable_mosaic.version = 11 : i64} {
  func.func @_linear_kernel(%arg0: i32, %arg1: memref<16x128xf32, #tpu.memory_space<vmem>>, %arg2: memref<128x128xf32, #tpu.memory_space<vmem>>, %arg3: memref<16x128xf32, #tpu.memory_space<vmem>>) attributes {dimension_semantics = [#tpu.dimension_semantics<parallel>], iteration_bounds = array<i64: 1>, scalar_prefetch = 0 : i64, scratch_operands = 0 : i64, tpu.core_type = #tpu.core_type<tc>, window_params = [{transform_indices = @transform_0, window_bounds = array<i64: 16, 128>}, {pipeline_mode = #tpu.pipeline_mode<synchronous>, transform_indices = @transform_1, window_bounds = array<i64: 128, 128>}, {transform_indices = @transform_2, window_bounds = array<i64: 16, 128>}]} {
    %c0 = arith.constant 0 : index
    %c0_0 = arith.constant 0 : index
    %0 = vector.load %arg1[%c0, %c0_0] : memref<16x128xf32, #tpu.memory_space<vmem>>, vector<16x128xf32>
    %c0_1 = arith.constant 0 : index
    %c0_2 = arith.constant 0 : index
    %1 = vector.load %arg2[%c0_1, %c0_2] : memref<128x128xf32, #tpu.memory_space<vmem>>, vector<128x128xf32>
    %cst = arith.constant dense<0.000000e+00> : vector<16x128xf32>
    %2 = tpu.matmul %0, %1, %cst {dimension_numbers = #tpu.dot_dimension_numbers<[1], [0], [0], [1], [0, 0, 1, 1], [], []>} : vector<16x128xf32>, vector<128x128xf32>, vector<16x128xf32> -> vector<16x128xf32>
    %c0_3 = arith.constant 0 : index
    %c0_4 = arith.constant 0 : index
    %3 = vector.load %arg3[%c0_3, %c0_4] : memref<16x128xf32, #tpu.memory_space<vmem>>, vector<16x128xf32>
    tpu.vector_store %arg3[%c0_3, %c0_4], %2 {strides = array<i32>} : memref<16x128xf32, #tpu.memory_space<vmem>>, vector<16x128xf32>,
    return
  }
  func.func @transform_0(%arg0: i32) -> (i32, i32) {
    %c0_i32 = arith.constant 0 : i32
    %c0_i32_0 = arith.constant 0 : i32
    return %arg0, %c0_i32 : i32, i32
  }
  func.func @transform_1(%arg0: i32) -> (i32, i32) {
    %c0_i32 = arith.constant 0 : i32
    %c0_i32_0 = arith.constant 0 : i32
    %c0_i32_1 = arith.constant 0 : i32
    return %c0_i32, %c0_i32_0 : i32, i32
  }
  func.func @transform_2(%arg0: i32) -> (i32, i32) {
    %c0_i32 = arith.constant 0 : i32
    %c0_i32_0 = arith.constant 0 : i32
    return %arg0, %c0_i32 : i32, i32
  }
}

module attributes {stable_mosaic.version = 11 : i64} {
  func.func @_interaction_kernel(%arg0: i32, %arg1: i32, %arg2: memref<16x128xf32, #tpu.memory_space<vmem>>, %arg3: memref<16x16x128xbf16, #tpu.memory_space<vmem>>, %arg4: memref<16x16xf32, #tpu.memory_space<vmem>>, %arg5: memref<16x128xf32, #tpu.memory_space<vmem>>, %arg6: memref<128x128xbf16, #tpu.memory_space<vmem>>, %arg7: memref<1x128xf32, #tpu.memory_space<vmem>>, %arg8: memref<128x128xf32, #tpu.memory_space<vmem>>, %arg9: memref<1x128xf32, #tpu.memory_space<vmem>>, %arg10: memref<128x128xf32, #tpu.memory_space<vmem>>, %arg11: memref<1x128xf32, #tpu.memory_space<vmem>>, %arg12: memref<128x128xf32, #tpu.memory_space<vmem>>, %arg13: memref<1x128xf32, #tpu.memory_space<vmem>>, %arg14: memref<16x128xf32, #tpu.memory_space<vmem>>, %arg15: memref<16x128xf32, #tpu.memory_space<vmem>>) attributes {dimension_semantics = [#tpu.dimension_semantics<parallel>, #tpu.dimension_semantics<arbitrary>], iteration_bounds = array<i64: 1, 1>, scalar_prefetch = 0 : i64, scratch_operands = 1 : i64, tpu.core_type = #tpu.core_type<tc>, window_params = [{transform_indices = @transform_0, window_bounds = array<i64: 16, 128>}, {transform_indices = @transform_1, window_bounds = array<i64: 16, 16, 128>}, {transform_indices = @transform_2, window_bounds = array<i64: 16, 16>}, {transform_indices = @transform_3, window_bounds = array<i64: 16, 128>}, {pipeline_mode = #tpu.pipeline_mode<synchronous>, transform_indices = @transform_4, window_bounds = array<i64: 128, 128>}, {pipeline_mode = #tpu.pipeline_mode<synchronous>, transform_indices = @transform_5, window_bounds = array<i64: 1, 128>}, {pipeline_mode = #tpu.pipeline_mode<synchronous>, transform_indices = @transform_6, window_bounds = array<i64: 128, 128>}, {pipeline_mode = #tpu.pipeline_mode<synchronous>, transform_indices = @transform_7, window_bounds = array<i64: 1, 128>}, {pipeline_mode = #tpu.pipeline_mode<synchronous>, transform_indices = @transform_8, window_bounds = array<i64: 128, 128>}, {pipeline_mode = #tpu.pipeline_mode<synchronous>, transform_indices = @transform_9, window_bounds = array<i64: 1, 128>}, {pipeline_mode = #tpu.pipeline_mode<synchronous>, transform_indices = @transform_10, window_bounds = array<i64: 128, 128>}, {pipeline_mode = #tpu.pipeline_mode<synchronous>, transform_indices = @transform_11, window_bounds = array<i64: 1, 128>}, {transform_indices = @transform_12, window_bounds = array<i64: 16, 128>}]} {
    %c0_i32 = arith.constant 0 : i32
    %0 = arith.cmpi eq, %arg1, %c0_i32 : i32
    %1 = arith.extui %0 : i1 to i32
    %c0_i32_0 = arith.constant 0 : i32
    %2 = arith.cmpi ne, %1, %c0_i32_0 : i32
    scf.if %2 {
      %cst_27 = arith.constant 0.000000e+00 : f32
      %43 = vector.broadcast %cst_27 : f32 to vector<16x128xf32>
      %c0_28 = arith.constant 0 : index
      %c0_29 = arith.constant 0 : index
      %44 = vector.load %arg15[%c0_28, %c0_29] : memref<16x128xf32, #tpu.memory_space<vmem>>, vector<16x128xf32>
      tpu.vector_store %arg15[%c0_28, %c0_29], %43 {strides = array<i32>} : memref<16x128xf32, #tpu.memory_space<vmem>>, vector<16x128xf32>,
    } else {
    }
    %c0 = arith.constant 0 : index
    %c0_1 = arith.constant 0 : index
    %c0_2 = arith.constant 0 : index
    %3 = vector.load %arg3[%c0, %c0_1, %c0_2] : memref<16x16x128xbf16, #tpu.memory_space<vmem>>, vector<16x16x128xbf16>
    %4 = vector.shape_cast %3 : vector<16x16x128xbf16> to vector<256x128xbf16>
    %c0_3 = arith.constant 0 : index
    %c0_4 = arith.constant 0 : index
    %5 = vector.load %arg6[%c0_3, %c0_4] : memref<128x128xbf16, #tpu.memory_space<vmem>>, vector<128x128xbf16>
    %cst = arith.constant dense<0.000000e+00> : vector<256x128xf32>
    %6 = tpu.matmul %4, %5, %cst {dimension_numbers = #tpu.dot_dimension_numbers<[1], [0], [0], [1], [0, 0, 1, 1], [], []>} : vector<256x128xbf16>, vector<128x128xbf16>, vector<256x128xf32> -> vector<256x128xf32>
    %c0_5 = arith.constant 0 : index
    %c0_6 = arith.constant 0 : index
    %7 = vector.load %arg7[%c0_5, %c0_6] : memref<1x128xf32, #tpu.memory_space<vmem>>, vector<1x128xf32>
    %8 = vector.broadcast %7 : vector<1x128xf32> to vector<256x128xf32>
    %9 = arith.addf %6, %8 : vector<256x128xf32>
    %cst_7 = arith.constant 0.000000e+00 : f32
    %10 = vector.broadcast %cst_7 : f32 to vector<256x128xf32>
    %11 = arith.maximumf %9, %10 : vector<256x128xf32>
    %12 = math.absf %9 : vector<256x128xf32>
    %cst_8 = arith.constant 0.000000e+00 : f32
    %13 = vector.broadcast %cst_8 : f32 to vector<256x128xf32>
    %14 = arith.subf %13, %12 : vector<256x128xf32>
    %15 = math.exp %14 : vector<256x128xf32>
    %cst_9 = arith.constant 1.000000e+00 : f32
    %16 = vector.broadcast %cst_9 : f32 to vector<256x128xf32>
    %17 = arith.addf %16, %15 : vector<256x128xf32>
    %18 = math.log %17 : vector<256x128xf32>
    %19 = arith.addf %11, %18 : vector<256x128xf32>
    %cst_10 = arith.constant 0.693147182 : f32
    %20 = vector.broadcast %cst_10 : f32 to vector<256x128xf32>
    %21 = arith.subf %19, %20 : vector<256x128xf32>
    %c0_11 = arith.constant 0 : index
    %c0_12 = arith.constant 0 : index
    %22 = vector.load %arg8[%c0_11, %c0_12] : memref<128x128xf32, #tpu.memory_space<vmem>>, vector<128x128xf32>
    %cst_13 = arith.constant dense<0.000000e+00> : vector<256x128xf32>
    %23 = tpu.matmul %21, %22, %cst_13 {dimension_numbers = #tpu.dot_dimension_numbers<[1], [0], [0], [1], [0, 0, 1, 1], [], []>} : vector<256x128xf32>, vector<128x128xf32>, vector<256x128xf32> -> vector<256x128xf32>
    %c0_14 = arith.constant 0 : index
    %c0_15 = arith.constant 0 : index
    %24 = vector.load %arg9[%c0_14, %c0_15] : memref<1x128xf32, #tpu.memory_space<vmem>>, vector<1x128xf32>
    %25 = vector.broadcast %24 : vector<1x128xf32> to vector<256x128xf32>
    %26 = arith.addf %23, %25 : vector<256x128xf32>
    %27 = vector.shape_cast %26 : vector<256x128xf32> to vector<16x16x128xf32>
    %c0_16 = arith.constant 0 : index
    %c0_17 = arith.constant 0 : index
    %28 = vector.load %arg4[%c0_16, %c0_17] : memref<16x16xf32, #tpu.memory_space<vmem>>, vector<16x16xf32>
    %29 = vector.shape_cast %28 : vector<16x16xf32> to vector<16x16x1xf32>
    %30 = vector.broadcast %29 : vector<16x16x1xf32> to vector<16x16x128xf32>
    %31 = arith.mulf %27, %30 : vector<16x16x128xf32>
    %c0_18 = arith.constant 0 : index
    %c0_19 = arith.constant 0 : index
    %32 = vector.load %arg15[%c0_18, %c0_19] : memref<16x128xf32, #tpu.memory_space<vmem>>, vector<16x128xf32>
    %c0_20 = arith.constant 0 : index
    %c0_21 = arith.constant 0 : index
    %33 = vector.load %arg5[%c0_20, %c0_21] : memref<16x128xf32, #tpu.memory_space<vmem>>, vector<16x128xf32>
    %34 = vector.shape_cast %33 : vector<16x128xf32> to vector<1x16x128xf32>
    %35 = vector.broadcast %34 : vector<1x16x128xf32> to vector<16x16x128xf32>
    %36 = arith.mulf %31, %35 : vector<16x16x128xf32>
    %cst_22 = arith.constant dense<0.000000e+00> : vector<16x128xf32>
    %37 = vector.multi_reduction <add>, %36, %cst_22 [1] : vector<16x16x128xf32> to vector<16x128xf32>
    %38 = arith.addf %32, %37 : vector<16x128xf32>
    %c0_23 = arith.constant 0 : index
    %c0_24 = arith.constant 0 : index
    %39 = vector.load %arg15[%c0_23, %c0_24] : memref<16x128xf32, #tpu.memory_space<vmem>>, vector<16x128xf32>
    tpu.vector_store %arg15[%c0_23, %c0_24], %38 {strides = array<i32>} : memref<16x128xf32, #tpu.memory_space<vmem>>, vector<16x128xf32>,
    %c0_i32_25 = arith.constant 0 : i32
    %40 = arith.cmpi eq, %arg1, %c0_i32_25 : i32
    %41 = arith.extui %40 : i1 to i32
    %c0_i32_26 = arith.constant 0 : i32
    %42 = arith.cmpi ne, %41, %c0_i32_26 : i32
    scf.if %42 {
      %c0_27 = arith.constant 0 : index
      %c0_28 = arith.constant 0 : index
      %43 = vector.load %arg15[%c0_27, %c0_28] : memref<16x128xf32, #tpu.memory_space<vmem>>, vector<16x128xf32>
      %c0_29 = arith.constant 0 : index
      %c0_30 = arith.constant 0 : index
      %44 = vector.load %arg10[%c0_29, %c0_30] : memref<128x128xf32, #tpu.memory_space<vmem>>, vector<128x128xf32>
      %cst_31 = arith.constant dense<0.000000e+00> : vector<16x128xf32>
      %45 = tpu.matmul %43, %44, %cst_31 {dimension_numbers = #tpu.dot_dimension_numbers<[1], [0], [0], [1], [0, 0, 1, 1], [], []>} : vector<16x128xf32>, vector<128x128xf32>, vector<16x128xf32> -> vector<16x128xf32>
      %c0_32 = arith.constant 0 : index
      %c0_33 = arith.constant 0 : index
      %46 = vector.load %arg11[%c0_32, %c0_33] : memref<1x128xf32, #tpu.memory_space<vmem>>, vector<1x128xf32>
      %47 = vector.broadcast %46 : vector<1x128xf32> to vector<16x128xf32>
      %48 = arith.addf %45, %47 : vector<16x128xf32>
      %cst_34 = arith.constant 0.000000e+00 : f32
      %49 = vector.broadcast %cst_34 : f32 to vector<16x128xf32>
      %50 = arith.maximumf %48, %49 : vector<16x128xf32>
      %51 = math.absf %48 : vector<16x128xf32>
      %cst_35 = arith.constant 0.000000e+00 : f32
      %52 = vector.broadcast %cst_35 : f32 to vector<16x128xf32>
      %53 = arith.subf %52, %51 : vector<16x128xf32>
      %54 = math.exp %53 : vector<16x128xf32>
      %cst_36 = arith.constant 1.000000e+00 : f32
      %55 = vector.broadcast %cst_36 : f32 to vector<16x128xf32>
      %56 = arith.addf %55, %54 : vector<16x128xf32>
      %57 = math.log %56 : vector<16x128xf32>
      %58 = arith.addf %50, %57 : vector<16x128xf32>
      %cst_37 = arith.constant 0.693147182 : f32
      %59 = vector.broadcast %cst_37 : f32 to vector<16x128xf32>
      %60 = arith.subf %58, %59 : vector<16x128xf32>
      %c0_38 = arith.constant 0 : index
      %c0_39 = arith.constant 0 : index
      %61 = vector.load %arg2[%c0_38, %c0_39] : memref<16x128xf32, #tpu.memory_space<vmem>>, vector<16x128xf32>
      %c0_40 = arith.constant 0 : index
      %c0_41 = arith.constant 0 : index
      %62 = vector.load %arg12[%c0_40, %c0_41] : memref<128x128xf32, #tpu.memory_space<vmem>>, vector<128x128xf32>
      %cst_42 = arith.constant dense<0.000000e+00> : vector<16x128xf32>
      %63 = tpu.matmul %60, %62, %cst_42 {dimension_numbers = #tpu.dot_dimension_numbers<[1], [0], [0], [1], [0, 0, 1, 1], [], []>} : vector<16x128xf32>, vector<128x128xf32>, vector<16x128xf32> -> vector<16x128xf32>
      %64 = arith.addf %61, %63 : vector<16x128xf32>
      %c0_43 = arith.constant 0 : index
      %c0_44 = arith.constant 0 : index
      %65 = vector.load %arg13[%c0_43, %c0_44] : memref<1x128xf32, #tpu.memory_space<vmem>>, vector<1x128xf32>
      %66 = vector.broadcast %65 : vector<1x128xf32> to vector<16x128xf32>
      %67 = arith.addf %64, %66 : vector<16x128xf32>
      %c0_45 = arith.constant 0 : index
      %c0_46 = arith.constant 0 : index
      %68 = vector.load %arg14[%c0_45, %c0_46] : memref<16x128xf32, #tpu.memory_space<vmem>>, vector<16x128xf32>
      tpu.vector_store %arg14[%c0_45, %c0_46], %67 {strides = array<i32>} : memref<16x128xf32, #tpu.memory_space<vmem>>, vector<16x128xf32>,
    } else {
    }
    return
  }
  func.func @transform_0(%arg0: i32, %arg1: i32) -> (i32, i32) {
    %c0_i32 = arith.constant 0 : i32
    %c0_i32_0 = arith.constant 0 : i32
    return %arg0, %c0_i32 : i32, i32
  }
  func.func @transform_1(%arg0: i32, %arg1: i32) -> (i32, i32, i32) {
    %c0_i32 = arith.constant 0 : i32
    %c0_i32_0 = arith.constant 0 : i32
    return %arg0, %arg1, %c0_i32 : i32, i32, i32
  }
  func.func @transform_2(%arg0: i32, %arg1: i32) -> (i32, i32) {
    %c0_i32 = arith.constant 0 : i32
    return %arg0, %arg1 : i32, i32
  }
  func.func @transform_3(%arg0: i32, %arg1: i32) -> (i32, i32) {
    %c0_i32 = arith.constant 0 : i32
    %c0_i32_0 = arith.constant 0 : i32
    return %arg1, %c0_i32 : i32, i32
  }
  func.func @transform_4(%arg0: i32, %arg1: i32) -> (i32, i32) {
    %c0_i32 = arith.constant 0 : i32
    %c0_i32_0 = arith.constant 0 : i32
    %c0_i32_1 = arith.constant 0 : i32
    return %c0_i32, %c0_i32_0 : i32, i32
  }
  func.func @transform_5(%arg0: i32, %arg1: i32) -> (i32, i32) {
    %c0_i32 = arith.constant 0 : i32
    %c0_i32_0 = arith.constant 0 : i32
    %c0_i32_1 = arith.constant 0 : i32
    return %c0_i32, %c0_i32_0 : i32, i32
  }
  func.func @transform_6(%arg0: i32, %arg1: i32) -> (i32, i32) {
    %c0_i32 = arith.constant 0 : i32
    %c0_i32_0 = arith.constant 0 : i32
    %c0_i32_1 = arith.constant 0 : i32
    return %c0_i32, %c0_i32_0 : i32, i32
  }
  func.func @transform_7(%arg0: i32, %arg1: i32) -> (i32, i32) {
    %c0_i32 = arith.constant 0 : i32
    %c0_i32_0 = arith.constant 0 : i32
    %c0_i32_1 = arith.constant 0 : i32
    return %c0_i32, %c0_i32_0 : i32, i32
  }
  func.func @transform_8(%arg0: i32, %arg1: i32) -> (i32, i32) {
    %c0_i32 = arith.constant 0 : i32
    %c0_i32_0 = arith.constant 0 : i32
    %c0_i32_1 = arith.constant 0 : i32
    return %c0_i32, %c0_i32_0 : i32, i32
  }
  func.func @transform_9(%arg0: i32, %arg1: i32) -> (i32, i32) {
    %c0_i32 = arith.constant 0 : i32
    %c0_i32_0 = arith.constant 0 : i32
    %c0_i32_1 = arith.constant 0 : i32
    return %c0_i32, %c0_i32_0 : i32, i32
  }
  func.func @transform_10(%arg0: i32, %arg1: i32) -> (i32, i32) {
    %c0_i32 = arith.constant 0 : i32
    %c0_i32_0 = arith.constant 0 : i32
    %c0_i32_1 = arith.constant 0 : i32
    return %c0_i32, %c0_i32_0 : i32, i32
  }
  func.func @transform_11(%arg0: i32, %arg1: i32) -> (i32, i32) {
    %c0_i32 = arith.constant 0 : i32
    %c0_i32_0 = arith.constant 0 : i32
    %c0_i32_1 = arith.constant 0 : i32
    return %c0_i32, %c0_i32_0 : i32, i32
  }
  func.func @transform_12(%arg0: i32, %arg1: i32) -> (i32, i32) {
    %c0_i32 = arith.constant 0 : i32
    %c0_i32_0 = arith.constant 0 : i32
    return %arg0, %c0_i32 : i32, i32
  }
}

module attributes {stable_mosaic.version = 11 : i64} {
  func.func @_readout_kernel(%arg0: i32, %arg1: memref<16x128xf32, #tpu.memory_space<vmem>>, %arg2: memref<16x2xf32, #tpu.memory_space<vmem>>, %arg3: memref<128x64xf32, #tpu.memory_space<vmem>>, %arg4: memref<1x64xf32, #tpu.memory_space<vmem>>, %arg5: memref<64x32xf32, #tpu.memory_space<vmem>>, %arg6: memref<1x32xf32, #tpu.memory_space<vmem>>, %arg7: memref<2x32xf32, #tpu.memory_space<vmem>>) attributes {dimension_semantics = [#tpu.dimension_semantics<arbitrary>], iteration_bounds = array<i64: 1>, scalar_prefetch = 0 : i64, scratch_operands = 0 : i64, tpu.core_type = #tpu.core_type<tc>, window_params = [{transform_indices = @transform_0, window_bounds = array<i64: 16, 128>}, {transform_indices = @transform_1, window_bounds = array<i64: 16, 2>}, {pipeline_mode = #tpu.pipeline_mode<synchronous>, transform_indices = @transform_2, window_bounds = array<i64: 128, 64>}, {pipeline_mode = #tpu.pipeline_mode<synchronous>, transform_indices = @transform_3, window_bounds = array<i64: 1, 64>}, {pipeline_mode = #tpu.pipeline_mode<synchronous>, transform_indices = @transform_4, window_bounds = array<i64: 64, 32>}, {pipeline_mode = #tpu.pipeline_mode<synchronous>, transform_indices = @transform_5, window_bounds = array<i64: 1, 32>}, {pipeline_mode = #tpu.pipeline_mode<synchronous>, transform_indices = @transform_6, window_bounds = array<i64: 2, 32>}]} {
    %c0_i32 = arith.constant 0 : i32
    %0 = arith.cmpi eq, %arg0, %c0_i32 : i32
    %1 = arith.extui %0 : i1 to i32
    %c0_i32_0 = arith.constant 0 : i32
    %2 = arith.cmpi ne, %1, %c0_i32_0 : i32
    scf.if %2 {
      %cst_22 = arith.constant 0.000000e+00 : f32
      %31 = vector.broadcast %cst_22 : f32 to vector<2x32xf32>
      %c0_23 = arith.constant 0 : index
      %c0_24 = arith.constant 0 : index
      %32 = vector.load %arg7[%c0_23, %c0_24] : memref<2x32xf32, #tpu.memory_space<vmem>>, vector<2x32xf32>
      tpu.vector_store %arg7[%c0_23, %c0_24], %31 {strides = array<i32>} : memref<2x32xf32, #tpu.memory_space<vmem>>, vector<2x32xf32>,
    } else {
    }
    %c0 = arith.constant 0 : index
    %c0_1 = arith.constant 0 : index
    %3 = vector.load %arg1[%c0, %c0_1] : memref<16x128xf32, #tpu.memory_space<vmem>>, vector<16x128xf32>
    %c0_2 = arith.constant 0 : index
    %c0_3 = arith.constant 0 : index
    %4 = vector.load %arg3[%c0_2, %c0_3] : memref<128x64xf32, #tpu.memory_space<vmem>>, vector<128x64xf32>
    %cst = arith.constant dense<0.000000e+00> : vector<16x64xf32>
    %5 = tpu.matmul %3, %4, %cst {dimension_numbers = #tpu.dot_dimension_numbers<[1], [0], [0], [1], [0, 0, 1, 1], [], []>} : vector<16x128xf32>, vector<128x64xf32>, vector<16x64xf32> -> vector<16x64xf32>
    %c0_4 = arith.constant 0 : index
    %c0_5 = arith.constant 0 : index
    %6 = vector.load %arg4[%c0_4, %c0_5] : memref<1x64xf32, #tpu.memory_space<vmem>>, vector<1x64xf32>
    %7 = vector.broadcast %6 : vector<1x64xf32> to vector<16x64xf32>
    %8 = arith.addf %5, %7 : vector<16x64xf32>
    %cst_6 = arith.constant 0.000000e+00 : f32
    %9 = vector.broadcast %cst_6 : f32 to vector<16x64xf32>
    %10 = arith.maximumf %8, %9 : vector<16x64xf32>
    %11 = math.absf %8 : vector<16x64xf32>
    %cst_7 = arith.constant 0.000000e+00 : f32
    %12 = vector.broadcast %cst_7 : f32 to vector<16x64xf32>
    %13 = arith.subf %12, %11 : vector<16x64xf32>
    %14 = math.exp %13 : vector<16x64xf32>
    %cst_8 = arith.constant 1.000000e+00 : f32
    %15 = vector.broadcast %cst_8 : f32 to vector<16x64xf32>
    %16 = arith.addf %15, %14 : vector<16x64xf32>
    %17 = math.log %16 : vector<16x64xf32>
    %18 = arith.addf %10, %17 : vector<16x64xf32>
    %cst_9 = arith.constant 0.693147182 : f32
    %19 = vector.broadcast %cst_9 : f32 to vector<16x64xf32>
    %20 = arith.subf %18, %19 : vector<16x64xf32>
    %c0_10 = arith.constant 0 : index
    %c0_11 = arith.constant 0 : index
    %21 = vector.load %arg5[%c0_10, %c0_11] : memref<64x32xf32, #tpu.memory_space<vmem>>, vector<64x32xf32>
    %cst_12 = arith.constant dense<0.000000e+00> : vector<16x32xf32>
    %22 = tpu.matmul %20, %21, %cst_12 {dimension_numbers = #tpu.dot_dimension_numbers<[1], [0], [0], [1], [0, 0, 1, 1], [], []>} : vector<16x64xf32>, vector<64x32xf32>, vector<16x32xf32> -> vector<16x32xf32>
    %c0_13 = arith.constant 0 : index
    %c0_14 = arith.constant 0 : index
    %23 = vector.load %arg6[%c0_13, %c0_14] : memref<1x32xf32, #tpu.memory_space<vmem>>, vector<1x32xf32>
    %24 = vector.broadcast %23 : vector<1x32xf32> to vector<16x32xf32>
    %25 = arith.addf %22, %24 : vector<16x32xf32>
    %c0_15 = arith.constant 0 : index
    %c0_16 = arith.constant 0 : index
    %26 = vector.load %arg7[%c0_15, %c0_16] : memref<2x32xf32, #tpu.memory_space<vmem>>, vector<2x32xf32>
    %c0_17 = arith.constant 0 : index
    %c0_18 = arith.constant 0 : index
    %27 = vector.load %arg2[%c0_17, %c0_18] : memref<16x2xf32, #tpu.memory_space<vmem>>, vector<16x2xf32>
    %cst_19 = arith.constant dense<0.000000e+00> : vector<2x32xf32>
    %28 = tpu.matmul %27, %25, %cst_19 {dimension_numbers = #tpu.dot_dimension_numbers<[0], [0], [1], [1], [0, 1, 1, 1], [], []>} : vector<16x2xf32>, vector<16x32xf32>, vector<2x32xf32> -> vector<2x32xf32>
    %29 = arith.addf %26, %28 : vector<2x32xf32>
    %c0_20 = arith.constant 0 : index
    %c0_21 = arith.constant 0 : index
    %30 = vector.load %arg7[%c0_20, %c0_21] : memref<2x32xf32, #tpu.memory_space<vmem>>, vector<2x32xf32>
    tpu.vector_store %arg7[%c0_20, %c0_21], %29 {strides = array<i32>} : memref<2x32xf32, #tpu.memory_space<vmem>>, vector<2x32xf32>,
    return
  }
  func.func @transform_0(%arg0: i32) -> (i32, i32) {
    %c0_i32 = arith.constant 0 : i32
    %c0_i32_0 = arith.constant 0 : i32
    return %arg0, %c0_i32 : i32, i32
  }
  func.func @transform_1(%arg0: i32) -> (i32, i32) {
    %c0_i32 = arith.constant 0 : i32
    %c0_i32_0 = arith.constant 0 : i32
    return %arg0, %c0_i32 : i32, i32
  }
  func.func @transform_2(%arg0: i32) -> (i32, i32) {
    %c0_i32 = arith.constant 0 : i32
    %c0_i32_0 = arith.constant 0 : i32
    %c0_i32_1 = arith.constant 0 : i32
    return %c0_i32, %c0_i32_0 : i32, i32
  }
  func.func @transform_3(%arg0: i32) -> (i32, i32) {
    %c0_i32 = arith.constant 0 : i32
    %c0_i32_0 = arith.constant 0 : i32
    %c0_i32_1 = arith.constant 0 : i32
    return %c0_i32, %c0_i32_0 : i32, i32
  }
  func.func @transform_4(%arg0: i32) -> (i32, i32) {
    %c0_i32 = arith.constant 0 : i32
    %c0_i32_0 = arith.constant 0 : i32
    %c0_i32_1 = arith.constant 0 : i32
    return %c0_i32, %c0_i32_0 : i32, i32
  }
  func.func @transform_5(%arg0: i32) -> (i32, i32) {
    %c0_i32 = arith.constant 0 : i32
    %c0_i32_0 = arith.constant 0 : i32
    %c0_i32_1 = arith.constant 0 : i32
    return %c0_i32, %c0_i32_0 : i32, i32
  }
  func.func @transform_6(%arg0: i32) -> (i32, i32) {
    %c0_i32 = arith.constant 0 : i32
    %c0_i32_0 = arith.constant 0 : i32
    %c0_i32_1 = arith.constant 0 : i32
    return %c0_i32, %c0_i32_0 : i32, i32
  }
}

</mosaic_0001>

<llo_original>
// kernel: schnet_forward.9
$region0: #{schnet_forward.9}
  #allocation0 [shape = 'u32[]', space=smem, size = 0x4, offset = 0x4, fixed_abs, tag = 'smem constant byte address 0x4 - core index']
  #allocation1 [shape = 'u32[144,128]{1,0:T(1,128)}', space=vmem, size = 0x12000, scoped, tag = 'internal scratch']
  %s0 = inlined_call_operand.vmem [shape: f32[16,128], index: 0, kind: input, shape index: {}]
  %s1 = inlined_call_operand.vmem [shape: f32[128,128], index: 1, kind: input, shape index: {}]
  %s2 = inlined_call_operand.vmem [shape: f32[16,128], index: 2, kind: output, shape index: {}]
  %s3 = sld [smem:[#allocation0]]
  $region18: #{schnet_forward.9} parent=0
    _
  %s5 = ssub.s32 1, %s3
  %s6 = scalar_select 0, %s5, %s3
  // Predicated region
  $region2: #{schnet_forward.9} parent=0 // pred_check
    _
  $region3: #{schnet_forward.9} parent=0 // pred_check_branch
    %8 = sbr.rel (0) target = $region5
  $region4: #{schnet_forward.9} parent=0 // pred_region
    _
  $region5: #{schnet_forward.9} parent=0 // pred_fallthru
    _
  // Predicated region
  $region6: #{schnet_forward.9} parent=0 // pred_check
    _
  $region7: #{schnet_forward.9} parent=0 // pred_check_branch
    %10 = sbr.rel (0) target = $region9
  $region8: #{schnet_forward.9} parent=0 // pred_region
    _
  $region9: #{schnet_forward.9} parent=0 // pred_fallthru
    _
  %v11 = vld [vmem:[%s0] sm:$0xff]
  %v12 = vld [vmem:[%s0 + $0x8] sm:$0xff]
  %v13 = vld [vmem:[%s1] sm:$0xff]
  %v14 = vld [vmem:[%s1 + $0x8] sm:$0xff]
  %v15 = vld [vmem:[%s1 + $0x10] sm:$0xff]
  %v16 = vld [vmem:[%s1 + $0x18] sm:$0xff]
  %v17 = vld [vmem:[%s1 + $0x20] sm:$0xff]
  %v18 = vld [vmem:[%s1 + $0x28] sm:$0xff]
  %v19 = vld [vmem:[%s1 + $0x30] sm:$0xff]
  %v20 = vld [vmem:[%s1 + $0x38] sm:$0xff]
  %v21 = vld [vmem:[%s1 + $0x40] sm:$0xff]
  %v22 = vld [vmem:[%s1 + $0x48] sm:$0xff]
  %v23 = vld [vmem:[%s1 + $0x50] sm:$0xff]
  %v24 = vld [vmem:[%s1 + $0x58] sm:$0xff]
  %v25 = vld [vmem:[%s1 + $0x60] sm:$0xff]
  %v26 = vld [vmem:[%s1 + $0x68] sm:$0xff]
  %v27 = vld [vmem:[%s1 + $0x70] sm:$0xff]
  %v28 = vld [vmem:[%s1 + $0x78] sm:$0xff]
  %29 = vmatprep.subr.mxu0 0.0
  %30 = vmatpush1.msra.mxu0 %v28
  %31 = vmatprep.subr.mxu0 0.0
  %32 = vmatpush1.msra.mxu0 %v27
  %33 = vmatprep.subr.mxu0 0.0
  %34 = vmatpush1.msra.mxu0 %v26
  %35 = vmatprep.subr.mxu0 0.0
  %36 = vmatpush1.msra.mxu0 %v25
  %37 = vmatprep.subr.mxu0 0.0
  %38 = vmatpush1.msra.mxu0 %v24
  %39 = vmatprep.subr.mxu0 0.0
  %40 = vmatpush1.msra.mxu0 %v23
  %41 = vmatprep.subr.mxu0 0.0
  %42 = vmatpush1.msra.mxu0 %v22
  %43 = vmatprep.subr.mxu0 0.0
  %44 = vmatpush1.msra.mxu0 %v21
  %45 = vmatprep.subr.mxu0 0.0
  %46 = vmatpush1.msra.mxu0 %v20
  %47 = vmatprep.subr.mxu0 0.0
  %48 = vmatpush1.msra.mxu0 %v19
  %49 = vmatprep.subr.mxu0 0.0
  %50 = vmatpush1.msra.mxu0 %v18
  %51 = vmatprep.subr.mxu0 0.0
  %52 = vmatpush1.msra.mxu0 %v17
  %53 = vmatprep.subr.mxu0 0.0
  %54 = vmatpush1.msra.mxu0 %v16
  %55 = vmatprep.subr.mxu0 0.0
  %56 = vmatpush1.msra.mxu0 %v15
  %57 = vmatprep.subr.mxu0 0.0
  %58 = vmatpush1.msra.mxu0 %v14
  %59 = vmatprep.subr.mxu0 0.0
  %60 = vmatpush1.msra.mxu0 %v13
  %61 = vmatprep.subr.mxu0 0.0
  %62 = vmatpush2.msra.mxu0 0.0
  %63 = vmatprep.subr.mxu0 0.0
  %64 = vmatpush2.msra.mxu0 0.0
  %65 = vmatprep.subr.mxu0 0.0
  %66 = vmatpush2.msra.mxu0 0.0
  %67 = vmatprep.subr.mxu0 0.0
  %68 = vmatpush2.msra.mxu0 0.0
  %69 = vmatprep.subr.mxu0 0.0
  %70 = vmatpush2.msra.mxu0 0.0
  %71 = vmatprep.subr.mxu0 0.0
  %72 = vmatpush2.msra.mxu0 0.0
  %73 = vmatprep.subr.mxu0 0.0
  %74 = vmatpush2.msra.mxu0 0.0
  %75 = vmatprep.subr.mxu0 0.0
  %76 = vmatpush2.msra.mxu0 0.0
  %77 = vmatprep.subr.mxu0 0.0
  %78 = vmatpush2.msra.mxu0 0.0
  %79 = vmatprep.subr.mxu0 0.0
  %80 = vmatpush2.msra.mxu0 0.0
  %81 = vmatprep.subr.mxu0 0.0
  %82 = vmatpush2.msra.mxu0 0.0
  %83 = vmatprep.subr.mxu0 0.0
  %84 = vmatpush2.msra.mxu0 0.0
  %85 = vmatprep.subr.mxu0 0.0
  %86 = vmatpush2.msra.mxu0 0.0
  %87 = vmatprep.subr.mxu0 0.0
  %88 = vmatpush2.msra.mxu0 0.0
  %89 = vmatprep.subr.mxu0 0.0
  %90 = vmatpush2.msra.mxu0 0.0
  %91 = vmatprep.subr.mxu0 0.0
  %92 = vmatpush2.msra.mxu0 0.0
  %93 = vmatprep.mubr.f32.mxu0 0.0
  %94 = vmatmul.mubr.f32.gmra.mxu0 %v11
  %v95 = vpop.f32.mrf.mxu0
  %v96 = vadd.f32 0.0, %v95
  %v97 = vpop.f32.mrf.mxu0
  %98 = vmatprep.mubr.f32.mxu0 0.0
  %99 = vmatmul.mubr.f32.gmra.mxu0 %v12
  %v100 = vpop.f32.mrf.mxu0
  %v101 = vadd.f32 0.0, %v100
  %v102 = vpop.f32.mrf.mxu0
  %103 = vdwg.mxu0
  %104 = vst [vmem:[%s2] sm:$0xff] %v96
  %105 = vst [vmem:[%s2 + $0x8] sm:$0xff] %v101
  // Predicated region
  $region10: #{schnet_forward.9} parent=0 // pred_check
    _
  $region11: #{schnet_forward.9} parent=0 // pred_check_branch
    %107 = sbr.rel (0) target = $region13
  $region12: #{schnet_forward.9} parent=0 // pred_region
    _
  $region13: #{schnet_forward.9} parent=0 // pred_fallthru
    _
  // Predicated region
  $region14: #{schnet_forward.9} parent=0 // pred_check
    _
  $region15: #{schnet_forward.9} parent=0 // pred_check_branch
    %109 = sbr.rel (0) target = $region17
  $region16: #{schnet_forward.9} parent=0 // pred_region
    _
  $region17: #{schnet_forward.9} parent=0 // pred_fallthru
    _

// kernel: schnet_forward.8
$region0: #{schnet_forward.8}
  #allocation0 [shape = 'u32[]', space=smem, size = 0x4, offset = 0x4, fixed_abs, tag = 'smem constant byte address 0x4 - core index']
  #allocation1 [shape = 'u32[144,128]{1,0:T(1,128)}', space=vmem, size = 0x12000, scoped, tag = 'internal scratch']
  %s0 = inlined_call_operand.vmem [shape: f32[16,16], index: 0, kind: input, shape index: {}]
  %s1 = inlined_call_operand.vmem [shape: f32[1,128], index: 1, kind: input, shape index: {}]
  %s2 = inlined_call_operand.vmem [shape: bf16[16,16,128], index: 2, kind: output, shape index: {}]
  %s3 = sld [smem:[#allocation0]]
  $region18: #{schnet_forward.8} parent=0
    _
  %s5 = ssub.s32 1, %s3
  %s6 = scalar_select 0, %s5, %s3
  // Predicated region
  $region2: #{schnet_forward.8} parent=0 // pred_check
    _
  $region3: #{schnet_forward.8} parent=0 // pred_check_branch
    %8 = sbr.rel (0) target = $region5
  $region4: #{schnet_forward.8} parent=0 // pred_region
    _
  $region5: #{schnet_forward.8} parent=0 // pred_fallthru
    _
  // Predicated region
  $region6: #{schnet_forward.8} parent=0 // pred_check
    _
  $region7: #{schnet_forward.8} parent=0 // pred_check_branch
    %10 = sbr.rel (0) target = $region9
  $region8: #{schnet_forward.8} parent=0 // pred_region
    _
  $region9: #{schnet_forward.8} parent=0 // pred_fallthru
    _
  %v11 = vld [vmem:[%s0] sm:$0xff]
  %v12 = vld [vmem:[%s0 + $0x8] sm:$0xff]
  %v13 = vld [vmem:[%s1] sm:$0x1]
  %v14 = vlaneseq
  %v15 = vshrl.u32 %v14, 7
  %v16 = vsub.s32 0, %v15
  %v17 = vrot.slane %v11, %v16
  %19 = vbcast.lane.b32.xlu0 %v17, 256
  %v20 = vpop.permute.xlu0 %19
  %s22 = sor.u32 256, 8
  %23 = vbcast.lane.b32.xlu0 %v17, %s22
  %v24 = vpop.permute.xlu0 %23
  %v25 = vlaneseq
  %v26 = vshrl.u32 %v25, 7
  %v27 = vsub.s32 1, %v26
  %v28 = vrot.slane %v11, %v27
  %30 = vbcast.lane.b32.xlu0 %v28, 256
  %v31 = vpop.permute.xlu0 %30
  %s33 = sor.u32 256, 8
  %34 = vbcast.lane.b32.xlu0 %v28, %s33
  %v35 = vpop.permute.xlu0 %34
  %v36 = vlaneseq
  %v37 = vshrl.u32 %v36, 7
  %v38 = vsub.s32 2, %v37
  %v39 = vrot.slane %v11, %v38
  %41 = vbcast.lane.b32.xlu0 %v39, 256
  %v42 = vpop.permute.xlu0 %41
  %s44 = sor.u32 256, 8
  %45 = vbcast.lane.b32.xlu0 %v39, %s44
  %v46 = vpop.permute.xlu0 %45
  %v47 = vlaneseq
  %v48 = vshrl.u32 %v47, 7
  %v49 = vsub.s32 3, %v48
  %v50 = vrot.slane %v11, %v49
  %52 = vbcast.lane.b32.xlu0 %v50, 256
  %v53 = vpop.permute.xlu0 %52
  %s55 = sor.u32 256, 8
  %56 = vbcast.lane.b32.xlu0 %v50, %s55
  %v57 = vpop.permute.xlu0 %56
  %v58 = vlaneseq
  %v59 = vshrl.u32 %v58, 7
  %v60 = vsub.s32 4, %v59
  %v61 = vrot.slane %v11, %v60
  %63 = vbcast.lane.b32.xlu0 %v61, 256
  %v64 = vpop.permute.xlu0 %63
  %s66 = sor.u32 256, 8
  %67 = vbcast.lane.b32.xlu0 %v61, %s66
  %v68 = vpop.permute.xlu0 %67
  %v69 = vlaneseq
  %v70 = vshrl.u32 %v69, 7
  %v71 = vsub.s32 5, %v70
  %v72 = vrot.slane %v11, %v71
  %74 = vbcast.lane.b32.xlu0 %v72, 256
  %v75 = vpop.permute.xlu0 %74
  %s77 = sor.u32 256, 8
  %78 = vbcast.lane.b32.xlu0 %v72, %s77
  %v79 = vpop.permute.xlu0 %78
  %v80 = vlaneseq
  %v81 = vshrl.u32 %v80, 7
  %v82 = vsub.s32 6, %v81
  %v83 = vrot.slane %v11, %v82
  %85 = vbcast.lane.b32.xlu0 %v83, 256
  %v86 = vpop.permute.xlu0 %85
  %s88 = sor.u32 256, 8
  %89 = vbcast.lane.b32.xlu0 %v83, %s88
  %v90 = vpop.permute.xlu0 %89
  %v91 = vlaneseq
  %v92 = vshrl.u32 %v91, 7
  %v93 = vsub.s32 7, %v92
  %v94 = vrot.slane %v11, %v93
  %96 = vbcast.lane.b32.xlu0 %v94, 256
  %v97 = vpop.permute.xlu0 %96
  %s99 = sor.u32 256, 8
  %100 = vbcast.lane.b32.xlu0 %v94, %s99
  %v101 = vpop.permute.xlu0 %100
  %v102 = vlaneseq
  %v103 = vshrl.u32 %v102, 7
  %v104 = vsub.s32 0, %v103
  %v105 = vrot.slane %v12, %v104
  %107 = vbcast.lane.b32.xlu0 %v105, 256
  %v108 = vpop.permute.xlu0 %107
  %s110 = sor.u32 256, 8
  %111 = vbcast.lane.b32.xlu0 %v105, %s110
  %v112 = vpop.permute.xlu0 %111
  %v113 = vlaneseq
  %v114 = vshrl.u32 %v113, 7
  %v115 = vsub.s32 1, %v114
  %v116 = vrot.slane %v12, %v115
  %118 = vbcast.lane.b32.xlu0 %v116, 256
  %v119 = vpop.permute.xlu0 %118
  %s121 = sor.u32 256, 8
  %122 = vbcast.lane.b32.xlu0 %v116, %s121
  %v123 = vpop.permute.xlu0 %122
  %v124 = vlaneseq
  %v125 = vshrl.u32 %v124, 7
  %v126 = vsub.s32 2, %v125
  %v127 = vrot.slane %v12, %v126
  %129 = vbcast.lane.b32.xlu0 %v127, 256
  %v130 = vpop.permute.xlu0 %129
  %s132 = sor.u32 256, 8
  %133 = vbcast.lane.b32.xlu0 %v127, %s132
  %v134 = vpop.permute.xlu0 %133
  %v135 = vlaneseq
  %v136 = vshrl.u32 %v135, 7
  %v137 = vsub.s32 3, %v136
  %v138 = vrot.slane %v12, %v137
  %140 = vbcast.lane.b32.xlu0 %v138, 256
  %v141 = vpop.permute.xlu0 %140
  %s143 = sor.u32 256, 8
  %144 = vbcast.lane.b32.xlu0 %v138, %s143
  %v145 = vpop.permute.xlu0 %144
  %v146 = vlaneseq
  %v147 = vshrl.u32 %v146, 7
  %v148 = vsub.s32 4, %v147
  %v149 = vrot.slane %v12, %v148
  %151 = vbcast.lane.b32.xlu0 %v149, 256
  %v152 = vpop.permute.xlu0 %151
  %s154 = sor.u32 256, 8
  %155 = vbcast.lane.b32.xlu0 %v149, %s154
  %v156 = vpop.permute.xlu0 %155
  %v157 = vlaneseq
  %v158 = vshrl.u32 %v157, 7
  %v159 = vsub.s32 5, %v158
  %v160 = vrot.slane %v12, %v159
  %162 = vbcast.lane.b32.xlu0 %v160, 256
  %v163 = vpop.permute.xlu0 %162
  %s165 = sor.u32 256, 8
  %166 = vbcast.lane.b32.xlu0 %v160, %s165
  %v167 = vpop.permute.xlu0 %166
  %v168 = vlaneseq
  %v169 = vshrl.u32 %v168, 7
  %v170 = vsub.s32 6, %v169
  %v171 = vrot.slane %v12, %v170
  %173 = vbcast.lane.b32.xlu0 %v171, 256
  %v174 = vpop.permute.xlu0 %173
  %s176 = sor.u32 256, 8
  %177 = vbcast.lane.b32.xlu0 %v171, %s176
  %v178 = vpop.permute.xlu0 %177
  %v179 = vlaneseq
  %v180 = vshrl.u32 %v179, 7
  %v181 = vsub.s32 7, %v180
  %v182 = vrot.slane %v12, %v181
  %184 = vbcast.lane.b32.xlu0 %v182, 256
  %v185 = vpop.permute.xlu0 %184
  %s187 = sor.u32 256, 8
  %188 = vbcast.lane.b32.xlu0 %v182, %s187
  %v189 = vpop.permute.xlu0 %188
  %v191 = vlaneseq
  %v192 = vshrl.u32 %v191, 7
  %v193 = vsub.s32 0, %v192
  %v194 = vrot.slane %v13, %v193
  %v196 = vsub.f32 %v20, %v194
  %v197 = vsub.f32 %v24, %v194
  %v198 = vsub.f32 %v31, %v194
  %v199 = vsub.f32 %v35, %v194
  %v200 = vsub.f32 %v42, %v194
  %v201 = vsub.f32 %v46, %v194
  %v202 = vsub.f32 %v53, %v194
  %v203 = vsub.f32 %v57, %v194
  %v204 = vsub.f32 %v64, %v194
  %v205 = vsub.f32 %v68, %v194
  %v206 = vsub.f32 %v75, %v194
  %v207 = vsub.f32 %v79, %v194
  %v208 = vsub.f32 %v86, %v194
  %v209 = vsub.f32 %v90, %v194
  %v210 = vsub.f32 %v97, %v194
  %v211 = vsub.f32 %v101, %v194
  %v212 = vsub.f32 %v108, %v194
  %v213 = vsub.f32 %v112, %v194
  %v214 = vsub.f32 %v119, %v194
  %v215 = vsub.f32 %v123, %v194
  %v216 = vsub.f32 %v130, %v194
  %v217 = vsub.f32 %v134, %v194
  %v218 = vsub.f32 %v141, %v194
  %v219 = vsub.f32 %v145, %v194
  %v220 = vsub.f32 %v152, %v194
  %v221 = vsub.f32 %v156, %v194
  %v222 = vsub.f32 %v163, %v194
  %v223 = vsub.f32 %v167, %v194
  %v224 = vsub.f32 %v174, %v194
  %v225 = vsub.f32 %v178, %v194
  %v226 = vsub.f32 %v185, %v194
  %v227 = vsub.f32 %v189, %v194
  %v228 = vmul.f32 %v196, -12.005
  %v229 = vmul.f32 %v197, -12.005
  %v230 = vmul.f32 %v198, -12.005
  %v231 = vmul.f32 %v199, -12.005
  %v232 = vmul.f32 %v200, -12.005
  %v233 = vmul.f32 %v201, -12.005
  %v234 = vmul.f32 %v202, -12.005
  %v235 = vmul.f32 %v203, -12.005
  %v236 = vmul.f32 %v204, -12.005
  %v237 = vmul.f32 %v205, -12.005
  %v238 = vmul.f32 %v206, -12.005
  %v239 = vmul.f32 %v207, -12.005
  %v240 = vmul.f32 %v208, -12.005
  %v241 = vmul.f32 %v209, -12.005
  %v242 = vmul.f32 %v210, -12.005
  %v243 = vmul.f32 %v211, -12.005
  %v244 = vmul.f32 %v212, -12.005
  %v245 = vmul.f32 %v213, -12.005
  %v246 = vmul.f32 %v214, -12.005
  %v247 = vmul.f32 %v215, -12.005
  %v248 = vmul.f32 %v216, -12.005
  %v249 = vmul.f32 %v217, -12.005
  %v250 = vmul.f32 %v218, -12.005
  %v251 = vmul.f32 %v219, -12.005
  %v252 = vmul.f32 %v220, -12.005
  %v253 = vmul.f32 %v221, -12.005
  %v254 = vmul.f32 %v222, -12.005
  %v255 = vmul.f32 %v223, -12.005
  %v256 = vmul.f32 %v224, -12.005
  %v257 = vmul.f32 %v225, -12.005
  %v258 = vmul.f32 %v226, -12.005
  %v259 = vmul.f32 %v227, -12.005
  %v260 = vmul.f32 %v228, %v196
  %v261 = vmul.f32 %v229, %v197
  %v262 = vmul.f32 %v230, %v198
  %v263 = vmul.f32 %v231, %v199
  %v264 = vmul.f32 %v232, %v200
  %v265 = vmul.f32 %v233, %v201
  %v266 = vmul.f32 %v234, %v202
  %v267 = vmul.f32 %v235, %v203
  %v268 = vmul.f32 %v236, %v204
  %v269 = vmul.f32 %v237, %v205
  %v270 = vmul.f32 %v238, %v206
  %v271 = vmul.f32 %v239, %v207
  %v272 = vmul.f32 %v240, %v208
  %v273 = vmul.f32 %v241, %v209
  %v274 = vmul.f32 %v242, %v210
  %v275 = vmul.f32 %v243, %v211
  %v276 = vmul.f32 %v244, %v212
  %v277 = vmul.f32 %v245, %v213
  %v278 = vmul.f32 %v246, %v214
  %v279 = vmul.f32 %v247, %v215
  %v280 = vmul.f32 %v248, %v216
  %v281 = vmul.f32 %v249, %v217
  %v282 = vmul.f32 %v250, %v218
  %v283 = vmul.f32 %v251, %v219
  %v284 = vmul.f32 %v252, %v220
  %v285 = vmul.f32 %v253, %v221
  %v286 = vmul.f32 %v254, %v222
  %v287 = vmul.f32 %v255, %v223
  %v288 = vmul.f32 %v256, %v224
  %v289 = vmul.f32 %v257, %v225
  %v290 = vmul.f32 %v258, %v226
  %v291 = vmul.f32 %v259, %v227
  %v292 = vmul.f32 %v260, 1.442695
  %v293 = vpow.pop %v292
  %v294 = vmul.f32 %v261, 1.442695
  %v295 = vpow.pop %v294
  %v296 = vmul.f32 %v262, 1.442695
  %v297 = vpow.pop %v296
  %v298 = vmul.f32 %v263, 1.442695
  %v299 = vpow.pop %v298
  %v300 = vmul.f32 %v264, 1.442695
  %v301 = vpow.pop %v300
  %v302 = vmul.f32 %v265, 1.442695
  %v303 = vpow.pop %v302
  %v304 = vmul.f32 %v266, 1.442695
  %v305 = vpow.pop %v304
  %v306 = vmul.f32 %v267, 1.442695
  %v307 = vpow.pop %v306
  %v308 = vmul.f32 %v268, 1.442695
  %v309 = vpow.pop %v308
  %v310 = vmul.f32 %v269, 1.442695
  %v311 = vpow.pop %v310
  %v312 = vmul.f32 %v270, 1.442695
  %v313 = vpow.pop %v312
  %v314 = vmul.f32 %v271, 1.442695
  %v315 = vpow.pop %v314
  %v316 = vmul.f32 %v272, 1.442695
  %v317 = vpow.pop %v316
  %v318 = vmul.f32 %v273, 1.442695
  %v319 = vpow.pop %v318
  %v320 = vmul.f32 %v274, 1.442695
  %v321 = vpow.pop %v320
  %v322 = vmul.f32 %v275, 1.442695
  %v323 = vpow.pop %v322
  %v324 = vmul.f32 %v276, 1.442695
  %v325 = vpow.pop %v324
  %v326 = vmul.f32 %v277, 1.442695
  %v327 = vpow.pop %v326
  %v328 = vmul.f32 %v278, 1.442695
  %v329 = vpow.pop %v328
  %v330 = vmul.f32 %v279, 1.442695
  %v331 = vpow.pop %v330
  %v332 = vmul.f32 %v280, 1.442695
  %v333 = vpow.pop %v332
  %v334 = vmul.f32 %v281, 1.442695
  %v335 = vpow.pop %v334
  %v336 = vmul.f32 %v282, 1.442695
  %v337 = vpow.pop %v336
  %v338 = vmul.f32 %v283, 1.442695
  %v339 = vpow.pop %v338
  %v340 = vmul.f32 %v284, 1.442695
  %v341 = vpow.pop %v340
  %v342 = vmul.f32 %v285, 1.442695
  %v343 = vpow.pop %v342
  %v344 = vmul.f32 %v286, 1.442695
  %v345 = vpow.pop %v344
  %v346 = vmul.f32 %v287, 1.442695
  %v347 = vpow.pop %v346
  %v348 = vmul.f32 %v288, 1.442695
  %v349 = vpow.pop %v348
  %v350 = vmul.f32 %v289, 1.442695
  %v351 = vpow.pop %v350
  %v352 = vmul.f32 %v290, 1.442695
  %v353 = vpow.pop %v352
  %v354 = vmul.f32 %v291, 1.442695
  %v355 = vpow.pop %v354
  %v356 = vpack.c.bf16 %v295, %v293
  %v357 = vpack.c.bf16 %v299, %v297
  %v358 = vpack.c.bf16 %v303, %v301
  %v359 = vpack.c.bf16 %v307, %v305
  %v360 = vpack.c.bf16 %v311, %v309
  %v361 = vpack.c.bf16 %v315, %v313
  %v362 = vpack.c.bf16 %v319, %v317
  %v363 = vpack.c.bf16 %v323, %v321
  %v364 = vpack.c.bf16 %v327, %v325
  %v365 = vpack.c.bf16 %v331, %v329
  %v366 = vpack.c.bf16 %v335, %v333
  %v367 = vpack.c.bf16 %v339, %v337
  %v368 = vpack.c.bf16 %v343, %v341
  %v369 = vpack.c.bf16 %v347, %v345
  %v370 = vpack.c.bf16 %v351, %v349
  %v371 = vpack.c.bf16 %v355, %v353
  %v388 = vunpack.c.l.b16 %v356
  %v389 = vunpack.c.h.b16 %v356
  %v390 = vunpack.c.l.b16 %v357
  %v391 = vunpack.c.h.b16 %v357
  %v392 = vunpack.c.l.b16 %v358
  %v393 = vunpack.c.h.b16 %v358
  %v394 = vunpack.c.l.b16 %v359
  %v395 = vunpack.c.h.b16 %v359
  %v396 = vunpack.c.l.b16 %v360
  %v397 = vunpack.c.h.b16 %v360
  %v398 = vunpack.c.l.b16 %v361
  %v399 = vunpack.c.h.b16 %v361
  %v400 = vunpack.c.l.b16 %v362
  %v401 = vunpack.c.h.b16 %v362
  %v402 = vunpack.c.l.b16 %v363
  %v403 = vunpack.c.h.b16 %v363
  %v404 = vunpack.c.l.b16 %v364
  %v405 = vunpack.c.h.b16 %v364
  %v406 = vunpack.c.l.b16 %v365
  %v407 = vunpack.c.h.b16 %v365
  %v408 = vunpack.c.l.b16 %v366
  %v409 = vunpack.c.h.b16 %v366
  %v410 = vunpack.c.l.b16 %v367
  %v411 = vunpack.c.h.b16 %v367
  %v412 = vunpack.c.l.b16 %v368
  %v413 = vunpack.c.h.b16 %v368
  %v414 = vunpack.c.l.b16 %v369
  %v415 = vunpack.c.h.b16 %v369
  %v416 = vunpack.c.l.b16 %v370
  %v417 = vunpack.c.h.b16 %v370
  %v418 = vunpack.c.l.b16 %v371
  %v419 = vunpack.c.h.b16 %v371
  %v420 = vpack.c.b16 %v388, %v388
  %v421 = vpack.c.b16 %v389, %v389
  %v422 = vpack.c.b16 %v390, %v390
  %v423 = vpack.c.b16 %v391, %v391
  %v424 = vpack.c.b16 %v392, %v392
  %v425 = vpack.c.b16 %v393, %v393
  %v426 = vpack.c.b16 %v394, %v394
  %v427 = vpack.c.b16 %v395, %v395
  %v428 = vpack.c.b16 %v396, %v396
  %v429 = vpack.c.b16 %v397, %v397
  %v430 = vpack.c.b16 %v398, %v398
  %v431 = vpack.c.b16 %v399, %v399
  %v432 = vpack.c.b16 %v400, %v400
  %v433 = vpack.c.b16 %v401, %v401
  %v434 = vpack.c.b16 %v402, %v402
  %v435 = vpack.c.b16 %v403, %v403
  %v436 = vpack.c.b16 %v404, %v404
  %v437 = vpack.c.b16 %v405, %v405
  %v438 = vpack.c.b16 %v406, %v406
  %v439 = vpack.c.b16 %v407, %v407
  %v440 = vpack.c.b16 %v408, %v408
  %v441 = vpack.c.b16 %v409, %v409
  %v442 = vpack.c.b16 %v410, %v410
  %v443 = vpack.c.b16 %v411, %v411
  %v444 = vpack.c.b16 %v412, %v412
  %v445 = vpack.c.b16 %v413, %v413
  %v446 = vpack.c.b16 %v414, %v414
  %v447 = vpack.c.b16 %v415, %v415
  %v448 = vpack.c.b16 %v416, %v416
  %v449 = vpack.c.b16 %v417, %v417
  %v450 = vpack.c.b16 %v418, %v418
  %v451 = vpack.c.b16 %v419, %v419
  %484 = vst [vmem:[%s2] sm:$0xf] %v420
  %485 = vst [vmem:[%s2 + $0x4] sm:$0xf] %v421
  %486 = vst [vmem:[%s2 + $0x8] sm:$0xf] %v422
  %487 = vst [vmem:[%s2 + $0xc] sm:$0xf] %v423
  %488 = vst [vmem:[%s2 + $0x10] sm:$0xf] %v424
  %489 = vst [vmem:[%s2 + $0x14] sm:$0xf] %v425
  %490 = vst [vmem:[%s2 + $0x18] sm:$0xf] %v426
  %491 = vst [vmem:[%s2 + $0x1c] sm:$0xf] %v427
  %492 = vst [vmem:[%s2 + $0x20] sm:$0xf] %v428
  %493 = vst [vmem:[%s2 + $0x24] sm:$0xf] %v429
  %494 = vst [vmem:[%s2 + $0x28] sm:$0xf] %v430
  %495 = vst [vmem:[%s2 + $0x2c] sm:$0xf] %v431
  %496 = vst [vmem:[%s2 + $0x30] sm:$0xf] %v432
  %497 = vst [vmem:[%s2 + $0x34] sm:$0xf] %v433
  %498 = vst [vmem:[%s2 + $0x38] sm:$0xf] %v434
  %499 = vst [vmem:[%s2 + $0x3c] sm:$0xf] %v435
  %500 = vst [vmem:[%s2 + $0x40] sm:$0xf] %v436
  %501 = vst [vmem:[%s2 + $0x44] sm:$0xf] %v437
  %502 = vst [vmem:[%s2 + $0x48] sm:$0xf] %v438
  %503 = vst [vmem:[%s2 + $0x4c] sm:$0xf] %v439
  %504 = vst [vmem:[%s2 + $0x50] sm:$0xf] %v440
  %505 = vst [vmem:[%s2 + $0x54] sm:$0xf] %v441
  %506 = vst [vmem:[%s2 + $0x58] sm:$0xf] %v442
  %507 = vst [vmem:[%s2 + $0x5c] sm:$0xf] %v443
  %508 = vst [vmem:[%s2 + $0x60] sm:$0xf] %v444
  %509 = vst [vmem:[%s2 + $0x64] sm:$0xf] %v445
  %510 = vst [vmem:[%s2 + $0x68] sm:$0xf] %v446
  %511 = vst [vmem:[%s2 + $0x6c] sm:$0xf] %v447
  %512 = vst [vmem:[%s2 + $0x70] sm:$0xf] %v448
  %513 = vst [vmem:[%s2 + $0x74] sm:$0xf] %v449
  %514 = vst [vmem:[%s2 + $0x78] sm:$0xf] %v450
  %515 = vst [vmem:[%s2 + $0x7c] sm:$0xf] %v451
  // Predicated region
  $region10: #{schnet_forward.8} parent=0 // pred_check
    _
  $region11: #{schnet_forward.8} parent=0 // pred_check_branch
    %517 = sbr.rel (0) target = $region13
  $region12: #{schnet_forward.8} parent=0 // pred_region
    _
  $region13: #{schnet_forward.8} parent=0 // pred_fallthru
    _
  // Predicated region
  $region14: #{schnet_forward.8} parent=0 // pred_check
    _
  $region15: #{schnet_forward.8} parent=0 // pred_check_branch
    %519 = sbr.rel (0) target = $region17
  $region16: #{schnet_forward.8} parent=0 // pred_region
    _
  $region17: #{schnet_forward.8} parent=0 // pred_fallthru
    _

// kernel: schnet_forward.15
$region0: #{schnet_forward.15}
  #allocation0 [shape = 'u32[]', space=smem, size = 0x4, offset = 0x4, fixed_abs, tag = 'smem constant byte address 0x4 - core index']
  #allocation1 [shape = 'u32[144,128]{1,0:T(1,128)}', space=vmem, size = 0x12000, scoped, tag = 'internal scratch']
  %s0 = inlined_call_operand.vmem [shape: f32[16,128], index: 0, kind: input, shape index: {}]
  %s1 = inlined_call_operand.vmem [shape: f32[16,2], index: 1, kind: input, shape index: {}]
  %s2 = inlined_call_operand.vmem [shape: f32[128,64], index: 2, kind: input, shape index: {}]
  %s3 = inlined_call_operand.vmem [shape: f32[1,64], index: 3, kind: input, shape index: {}]
  %s4 = inlined_call_operand.vmem [shape: f32[64,32], index: 4, kind: input, shape index: {}]
  %s5 = inlined_call_operand.vmem [shape: f32[1,32], index: 5, kind: input, shape index: {}]
  %s6 = inlined_call_operand.hbm [shape: f32[2,32], index: 6, kind: output, shape index: {}]
  %s7 = sld [smem:[#allocation0]]
  $region38: #{schnet_forward.15} parent=0
    _
  %s9 = ssub.s32 1, %s7
  %s10 = scalar_select 0, %s9, %s7
  $region1: #{schnet_forward.15} parent=0
    #allocation2 [shape = 'u8[1024]{0}', space=vmem, size = 0x400, scoped, tag = 'output window, operand 0, single buffered']
    #allocation3 [shape = 's32[1]{0}', space=sflag, size = 0x4, scoped, tag = 'scoped memory for schnet_forward.15']
    %11 = vsyncpa [#allocation3], 0
    // Predicated region
    $region2: #{schnet_forward.15} parent=1 // pred_check
      _
    $region3: #{schnet_forward.15} parent=1 // pred_check_branch
      %13 = sbr.rel (0) target = $region5
    $region4: #{schnet_forward.15} parent=1 // pred_region
      _
    $region5: #{schnet_forward.15} parent=1 // pred_fallthru
      _
    // Predicated region
    $region6: #{schnet_forward.15} parent=1 // pred_check
      _
    $region7: #{schnet_forward.15} parent=1 // pred_check_branch
      %15 = sbr.rel (0) target = $region9
    $region8: #{schnet_forward.15} parent=1 // pred_region
      _
    $region9: #{schnet_forward.15} parent=1 // pred_fallthru
      _
    // Predicated region
    $region10: #{schnet_forward.15} parent=1 // pred_check
      _
    $region11: #{schnet_forward.15} parent=1 // pred_check_branch
      %17 = sbr.rel (0) target = $region13
    $region12: #{schnet_forward.15} parent=1 // pred_region
      _
    $region13: #{schnet_forward.15} parent=1 // pred_fallthru
      _
    // Predicated region
    $region14: #{schnet_forward.15} parent=1 // pred_check
      _
    $region15: #{schnet_forward.15} parent=1 // pred_check_branch
      %19 = sbr.rel (0) target = $region17
    $region16: #{schnet_forward.15} parent=1 // pred_region
      _
    $region17: #{schnet_forward.15} parent=1 // pred_fallthru
      _
    // Predicated region
    $region18: #{schnet_forward.15} parent=1 // pred_check
      _
    $region19: #{schnet_forward.15} parent=1 // pred_check_branch
      %21 = sbr.rel (0) target = $region21
    $region20: #{schnet_forward.15} parent=1 // pred_region
      _
    $region21: #{schnet_forward.15} parent=1 // pred_fallthru
      _
    // Predicated region
    $region22: #{schnet_forward.15} parent=1 // pred_check
      _
    $region23: #{schnet_forward.15} parent=1 // pred_check_branch
      %23 = sbr.rel (0) target = $region25
    $region24: #{schnet_forward.15} parent=1 // pred_region
      _
    $region25: #{schnet_forward.15} parent=1 // pred_fallthru
      _
    %p24 = scmp.eq.s32.totalorder 0, 0
    // Predicated region
    $region26: #{schnet_forward.15} parent=1 // pred_check
      %p25 = pneg %p24
    $region27: #{schnet_forward.15} parent=1 // pred_check_branch
      %27 = sbr.rel (%p25) target = $region29
    $region28: #{schnet_forward.15} parent=1 // pred_region
      %vm28 = vcmask 254976
      %29 = vst.msk [vmem:[#allocation2] sm:$0x3] %vm28, 0.0
    $region29: #{schnet_forward.15} parent=1 // pred_fallthru
      _
    %v30 = vld [vmem:[%s0] sm:$0xff]
    %v31 = vld [vmem:[%s0 + $0x8] sm:$0xff]
    %v32 = vld [vmem:[%s2] sm:$0xff]
    %v33 = vld [vmem:[%s2 + $0x8] sm:$0xff]
    %v34 = vld [vmem:[%s2 + $0x10] sm:$0xff]
    %v35 = vld [vmem:[%s2 + $0x18] sm:$0xff]
    %v36 = vld [vmem:[%s2 + $0x20] sm:$0xff]
    %v37 = vld [vmem:[%s2 + $0x28] sm:$0xff]
    %v38 = vld [vmem:[%s2 + $0x30] sm:$0xff]
    %v39 = vld [vmem:[%s2 + $0x38] sm:$0xff]
    %v40 = vld [vmem:[%s2 + $0x40] sm:$0xff]
    %v41 = vld [vmem:[%s2 + $0x48] sm:$0xff]
    %v42 = vld [vmem:[%s2 + $0x50] sm:$0xff]
    %v43 = vld [vmem:[%s2 + $0x58] sm:$0xff]
    %v44 = vld [vmem:[%s2 + $0x60] sm:$0xff]
    %v45 = vld [vmem:[%s2 + $0x68] sm:$0xff]
    %v46 = vld [vmem:[%s2 + $0x70] sm:$0xff]
    %v47 = vld [vmem:[%s2 + $0x78] sm:$0xff]
    %v48 = vld [vmem:[%s3] sm:$0x1]
    %v50 = vlaneseq
    %v51 = vshrl.u32 %v50, 7
    %v52 = vsub.s32 0, %v51
    %v53 = vrot.slane %v48, %v52
    %55 = vmatprep.subr.mxu0 0.0
    %56 = vmatpush1.msra.mxu0 %v47
    %57 = vmatprep.subr.mxu0 0.0
    %58 = vmatpush1.msra.mxu0 %v46
    %59 = vmatprep.subr.mxu0 0.0
    %60 = vmatpush1.msra.mxu0 %v45
    %61 = vmatprep.subr.mxu0 0.0
    %62 = vmatpush1.msra.mxu0 %v44
    %63 = vmatprep.subr.mxu0 0.0
    %64 = vmatpush1.msra.mxu0 %v43
    %65 = vmatprep.subr.mxu0 0.0
    %66 = vmatpush1.msra.mxu0 %v42
    %67 = vmatprep.subr.mxu0 0.0
    %68 = vmatpush1.msra.mxu0 %v41
    %69 = vmatprep.subr.mxu0 0.0
    %70 = vmatpush1.msra.mxu0 %v40
    %71 = vmatprep.subr.mxu0 0.0
    %72 = vmatpush1.msra.mxu0 %v39
    %73 = vmatprep.subr.mxu0 0.0
    %74 = vmatpush1.msra.mxu0 %v38
    %75 = vmatprep.subr.mxu0 0.0
    %76 = vmatpush1.msra.mxu0 %v37
    %77 = vmatprep.subr.mxu0 0.0
    %78 = vmatpush1.msra.mxu0 %v36
    %79 = vmatprep.subr.mxu0 0.0
    %80 = vmatpush1.msra.mxu0 %v35
    %81 = vmatprep.subr.mxu0 0.0
    %82 = vmatpush1.msra.mxu0 %v34
    %83 = vmatprep.subr.mxu0 0.0
    %84 = vmatpush1.msra.mxu0 %v33
    %85 = vmatprep.subr.mxu0 0.0
    %86 = vmatpush1.msra.mxu0 %v32
    %87 = vmatprep.subr.mxu0 0.0
    %88 = vmatpush2.msra.mxu0 0.0
    %89 = vmatprep.subr.mxu0 0.0
    %90 = vmatpush2.msra.mxu0 0.0
    %91 = vmatprep.subr.mxu0 0.0
    %92 = vmatpush2.msra.mxu0 0.0
    %93 = vmatprep.subr.mxu0 0.0
    %94 = vmatpush2.msra.mxu0 0.0
    %95 = vmatprep.subr.mxu0 0.0
    %96 = vmatpush2.msra.mxu0 0.0
    %97 = vmatprep.subr.mxu0 0.0
    %98 = vmatpush2.msra.mxu0 0.0
    %99 = vmatprep.subr.mxu0 0.0
    %100 = vmatpush2.msra.mxu0 0.0
    %101 = vmatprep.subr.mxu0 0.0
    %102 = vmatpush2.msra.mxu0 0.0
    %103 = vmatprep.subr.mxu0 0.0
    %104 = vmatpush2.msra.mxu0 0.0
    %105 = vmatprep.subr.mxu0 0.0
    %106 = vmatpush2.msra.mxu0 0.0
    %107 = vmatprep.subr.mxu0 0.0
    %108 = vmatpush2.msra.mxu0 0.0
    %109 = vmatprep.subr.mxu0 0.0
    %110 = vmatpush2.msra.mxu0 0.0
    %111 = vmatprep.subr.mxu0 0.0
    %112 = vmatpush2.msra.mxu0 0.0
    %113 = vmatprep.subr.mxu0 0.0
    %114 = vmatpush2.msra.mxu0 0.0
    %115 = vmatprep.subr.mxu0 0.0
    %116 = vmatpush2.msra.mxu0 0.0
    %117 = vmatprep.subr.mxu0 0.0
    %118 = vmatpush2.msra.mxu0 0.0
    %119 = vmatprep.mubr.f32.mxu0 0.0
    %120 = vmatmul.mubr.f32.gmra.mxu0 %v30
    %v121 = vpop.f32.mrf.mxu0
    %v122 = vadd.f32 %v53, %v121
    %v123 = vpop.f32.mrf.mxu0
    %124 = vmatprep.mubr.f32.mxu0 0.0
    %125 = vmatmul.mubr.f32.gmra.mxu0 %v31
    %v126 = vpop.f32.mrf.mxu0
    %v127 = vadd.f32 %v53, %v126
    %v128 = vpop.f32.mrf.mxu0
    %129 = vdwg.mxu0
    %v130 = vmax.f32 %v122, 0.0
    %v131 = vmax.f32 %v127, 0.0
    %v132 = vand.u32 2147483647, %v122
    %v133 = vand.u32 2147483647, %v127
    %v134 = vsub.f32 0.0, %v132
    %v135 = vsub.f32 0.0, %v133
    %v136 = vmul.f32 %v134, 1.442695
    %v137 = vpow.pop %v136
    %v138 = vmul.f32 %v135, 1.442695
    %v139 = vpow.pop %v138
    %v140 = vadd.f32 %v137, 1.0
    %v141 = vadd.f32 %v139, 1.0
    %v142 = vlog2.pop %v140
    %v143 = vmul.f32 %v142, 0.6931472
    %v144 = vlog2.pop %v141
    %v145 = vmul.f32 %v144, 0.6931472
    %v146 = vadd.f32 %v130, %v143
    %v147 = vadd.f32 %v131, %v145
    %v148 = vsub.f32 %v146, 0.6931472
    %v149 = vsub.f32 %v147, 0.6931472
    %v150 = vld [vmem:[%s4] sm:$0xff]
    %v151 = vld [vmem:[%s4 + $0x8] sm:$0xff]
    %v152 = vld [vmem:[%s4 + $0x10] sm:$0xff]
    %v153 = vld [vmem:[%s4 + $0x18] sm:$0xff]
    %v154 = vld [vmem:[%s4 + $0x20] sm:$0xff]
    %v155 = vld [vmem:[%s4 + $0x28] sm:$0xff]
    %v156 = vld [vmem:[%s4 + $0x30] sm:$0xff]
    %v157 = vld [vmem:[%s4 + $0x38] sm:$0xff]
    %v158 = vld [vmem:[%s5] sm:$0x1]
    %v160 = vlaneseq
    %v161 = vshrl.u32 %v160, 7
    %v162 = vsub.s32 0, %v161
    %v163 = vrot.slane %v158, %v162
    %vm165 = vcmask 523264
    %v167 = vsel %vm165, %v148, 0
    %v170 = vsel %vm165, %v149, 0
    %172 = vmatprep.subr.mxu0 0.0
    %173 = vmatpush1.msra.mxu0 0.0
    %174 = vmatprep.subr.mxu0 0.0
    %175 = vmatpush1.msra.mxu0 0.0
    %176 = vmatprep.subr.mxu0 0.0
    %177 = vmatpush1.msra.mxu0 0.0
    %178 = vmatprep.subr.mxu0 0.0
    %179 = vmatpush1.msra.mxu0 0.0
    %180 = vmatprep.subr.mxu0 0.0
    %181 = vmatpush1.msra.mxu0 0.0
    %182 = vmatprep.subr.mxu0 0.0
    %183 = vmatpush1.msra.mxu0 0.0
    %184 = vmatprep.subr.mxu0 0.0
    %185 = vmatpush1.msra.mxu0 0.0
    %186 = vmatprep.subr.mxu0 0.0
    %187 = vmatpush1.msra.mxu0 0.0
    %188 = vmatprep.subr.mxu0 0.0
    %189 = vmatpush1.msra.mxu0 %v157
    %190 = vmatprep.subr.mxu0 0.0
    %191 = vmatpush1.msra.mxu0 %v156
    %192 = vmatprep.subr.mxu0 0.0
    %193 = vmatpush1.msra.mxu0 %v155
    %194 = vmatprep.subr.mxu0 0.0
    %195 = vmatpush1.msra.mxu0 %v154
    %196 = vmatprep.subr.mxu0 0.0
    %197 = vmatpush1.msra.mxu0 %v153
    %198 = vmatprep.subr.mxu0 0.0
    %199 = vmatpush1.msra.mxu0 %v152
    %200 = vmatprep.subr.mxu0 0.0
    %201 = vmatpush1.msra.mxu0 %v151
    %202 = vmatprep.subr.mxu0 0.0
    %203 = vmatpush1.msra.mxu0 %v150
    %204 = vmatprep.subr.mxu0 0.0
    %205 = vmatpush2.msra.mxu0 0.0
    %206 = vmatprep.subr.mxu0 0.0
    %207 = vmatpush2.msra.mxu0 0.0
    %208 = vmatprep.subr.mxu0 0.0
    %209 = vmatpush2.msra.mxu0 0.0
    %210 = vmatprep.subr.mxu0 0.0
    %211 = vmatpush2.msra.mxu0 0.0
    %212 = vmatprep.subr.mxu0 0.0
    %213 = vmatpush2.msra.mxu0 0.0
    %214 = vmatprep.subr.mxu0 0.0
    %215 = vmatpush2.msra.mxu0 0.0
    %216 = vmatprep.subr.mxu0 0.0
    %217 = vmatpush2.msra.mxu0 0.0
    %218 = vmatprep.subr.mxu0 0.0
    %219 = vmatpush2.msra.mxu0 0.0
    %220 = vmatprep.subr.mxu0 0.0
    %221 = vmatpush2.msra.mxu0 0.0
    %222 = vmatprep.subr.mxu0 0.0
    %223 = vmatpush2.msra.mxu0 0.0
    %224 = vmatprep.subr.mxu0 0.0
    %225 = vmatpush2.msra.mxu0 0.0
    %226 = vmatprep.subr.mxu0 0.0
    %227 = vmatpush2.msra.mxu0 0.0
    %228 = vmatprep.subr.mxu0 0.0
    %229 = vmatpush2.msra.mxu0 0.0
    %230 = vmatprep.subr.mxu0 0.0
    %231 = vmatpush2.msra.mxu0 0.0
    %232 = vmatprep.subr.mxu0 0.0
    %233 = vmatpush2.msra.mxu0 0.0
    %234 = vmatprep.subr.mxu0 0.0
    %235 = vmatpush2.msra.mxu0 0.0
    %236 = vmatprep.mubr.f32.mxu0 0.0
    %237 = vmatmul.mubr.f32.gmra.mxu0 %v167
    %v238 = vpop.f32.mrf.mxu0
    %v239 = vadd.f32 %v163, %v238
    %v240 = vpop.f32.mrf.mxu0
    %241 = vmatprep.mubr.f32.mxu0 0.0
    %242 = vmatmul.mubr.f32.gmra.mxu0 %v170
    %v243 = vpop.f32.mrf.mxu0
    %v244 = vadd.f32 %v163, %v243
    %v245 = vpop.f32.mrf.mxu0
    %246 = vdwg.mxu0
    %v247 = vld [vmem:[#allocation2] sm:$0x3]
    %v248 = vld [vmem:[%s1] sm:$0xff]
    %v249 = vld [vmem:[%s1 + $0x8] sm:$0xff]
    %250 = vxpose.xlu0.b32.start [1/16] %v248, 128
    %251 = vxpose.xlu0.b32.cont [2/16] %v249, 128
    %252 = vxpose.xlu0.b32.cont [3/16] 0.0, 128
    %253 = vxpose.xlu0.b32.cont [4/16] 0.0, 128
    %254 = vxpose.xlu0.b32.cont [5/16] 0.0, 128
    %255 = vxpose.xlu0.b32.cont [6/16] 0.0, 128
    %256 = vxpose.xlu0.b32.cont [7/16] 0.0, 128
    %257 = vxpose.xlu0.b32.cont [8/16] 0.0, 128
    %258 = vxpose.xlu0.b32.cont [9/16] 0.0, 128
    %259 = vxpose.xlu0.b32.cont [10/16] 0.0, 128
    %260 = vxpose.xlu0.b32.cont [11/16] 0.0, 128
    %261 = vxpose.xlu0.b32.cont [12/16] 0.0, 128
    %262 = vxpose.xlu0.b32.cont [13/16] 0.0, 128
    %263 = vxpose.xlu0.b32.cont [14/16] 0.0, 128
    %264 = vxpose.xlu0.b32.cont [15/16] 0.0, 128
    %265 = vxpose.xlu0.b32.end [16/16] 0.0, 128
    %v266 = vpop.trf.xlu0
    %v267 = vpop.trf.xlu0
    %v268 = vpop.trf.xlu0
    %v269 = vpop.trf.xlu0
    %v270 = vpop.trf.xlu0
    %v271 = vpop.trf.xlu0
    %v272 = vpop.trf.xlu0
    %v273 = vpop.trf.xlu0
    %v274 = vpop.trf.xlu0
    %v275 = vpop.trf.xlu0
    %v276 = vpop.trf.xlu0
    %v277 = vpop.trf.xlu0
    %v278 = vpop.trf.xlu0
    %v279 = vpop.trf.xlu0
    %v280 = vpop.trf.xlu0
    %v281 = vpop.trf.xlu0
    %vm282 = vcmask 130048
    %v284 = vsel %vm282, %v266, 0
    %286 = vmatprep.subr.mxu0 0.0
    %287 = vmatpush1.msra.mxu0 0.0
    %288 = vmatprep.subr.mxu0 0.0
    %289 = vmatpush1.msra.mxu0 0.0
    %290 = vmatprep.subr.mxu0 0.0
    %291 = vmatpush1.msra.mxu0 0.0
    %292 = vmatprep.subr.mxu0 0.0
    %293 = vmatpush1.msra.mxu0 0.0
    %294 = vmatprep.subr.mxu0 0.0
    %295 = vmatpush1.msra.mxu0 0.0
    %296 = vmatprep.subr.mxu0 0.0
    %297 = vmatpush1.msra.mxu0 0.0
    %298 = vmatprep.subr.mxu0 0.0
    %299 = vmatpush1.msra.mxu0 0.0
    %300 = vmatprep.subr.mxu0 0.0
    %301 = vmatpush1.msra.mxu0 0.0
    %302 = vmatprep.subr.mxu0 0.0
    %303 = vmatpush1.msra.mxu0 0.0
    %304 = vmatprep.subr.mxu0 0.0
    %305 = vmatpush1.msra.mxu0 0.0
    %306 = vmatprep.subr.mxu0 0.0
    %307 = vmatpush1.msra.mxu0 0.0
    %308 = vmatprep.subr.mxu0 0.0
    %309 = vmatpush1.msra.mxu0 0.0
    %310 = vmatprep.subr.mxu0 0.0
    %311 = vmatpush1.msra.mxu0 0.0
    %312 = vmatprep.subr.mxu0 0.0
    %313 = vmatpush1.msra.mxu0 0.0
    %314 = vmatprep.subr.mxu0 0.0
    %315 = vmatpush1.msra.mxu0 %v244
    %316 = vmatprep.subr.mxu0 0.0
    %317 = vmatpush1.msra.mxu0 %v239
    %318 = vmatprep.subr.mxu0 0.0
    %319 = vmatpush2.msra.mxu0 0.0
    %320 = vmatprep.subr.mxu0 0.0
    %321 = vmatpush2.msra.mxu0 0.0
    %322 = vmatprep.subr.mxu0 0.0
    %323 = vmatpush2.msra.mxu0 0.0
    %324 = vmatprep.subr.mxu0 0.0
    %325 = vmatpush2.msra.mxu0 0.0
    %326 = vmatprep.subr.mxu0 0.0
    %327 = vmatpush2.msra.mxu0 0.0
    %328 = vmatprep.subr.mxu0 0.0
    %329 = vmatpush2.msra.mxu0 0.0
    %330 = vmatprep.subr.mxu0 0.0
    %331 = vmatpush2.msra.mxu0 0.0
    %332 = vmatprep.subr.mxu0 0.0
    %333 = vmatpush2.msra.mxu0 0.0
    %334 = vmatprep.subr.mxu0 0.0
    %335 = vmatpush2.msra.mxu0 0.0
    %336 = vmatprep.subr.mxu0 0.0
    %337 = vmatpush2.msra.mxu0 0.0
    %338 = vmatprep.subr.mxu0 0.0
    %339 = vmatpush2.msra.mxu0 0.0
    %340 = vmatprep.subr.mxu0 0.0
    %341 = vmatpush2.msra.mxu0 0.0
    %342 = vmatprep.subr.mxu0 0.0
    %343 = vmatpush2.msra.mxu0 0.0
    %344 = vmatprep.subr.mxu0 0.0
    %345 = vmatpush2.msra.mxu0 0.0
    %346 = vmatprep.subr.mxu0 0.0
    %347 = vmatpush2.msra.mxu0 0.0
    %348 = vmatprep.subr.mxu0 0.0
    %349 = vmatpush2.msra.mxu0 0.0
    %350 = vmatprep.mubr.f32.mxu0 0.0
    %351 = vmatmul.mubr.f32.gmra.mxu0 %v284
    %v352 = vpop.f32.mrf.mxu0
    %v353 = vadd.f32 0.0, %v352
    %v354 = vpop.f32.mrf.mxu0
    %355 = vdwg.mxu0
    %v356 = vadd.f32 %v247, %v353
    %vm357 = vcmask 254976
    %358 = vst.msk [vmem:[#allocation2] sm:$0x3] %vm357, %v356
    // Predicated region
    $region30: #{schnet_forward.15} parent=1 // pred_check
      _
    $region31: #{schnet_forward.15} parent=1 // pred_check_branch
      %360 = sbr.rel (0) target = $region33
    $region32: #{schnet_forward.15} parent=1 // pred_region
      %s362 = ssub.s32 32, 32
      %363 = vsyncadd [#allocation3], %s362
      %s365 = sshll.u32 [#allocation2], 4
      %s366 = int_to_ptr.vmem [resolvable:$true] %s365
      %368 = dma.vmem_to_hbm [thread:$0]  %s366, 32, %s6, [#allocation3]
    $region33: #{schnet_forward.15} parent=1 // pred_fallthru
      _
    // Predicated region
    $region34: #{schnet_forward.15} parent=1 // pred_check
      _
    $region35: #{schnet_forward.15} parent=1 // pred_check_branch
      %370 = sbr.rel (0) target = $region37
    $region36: #{schnet_forward.15} parent=1 // pred_region
      %371 = dma.done [#allocation3], 32
    $region37: #{schnet_forward.15} parent=1 // pred_fallthru
      _
    %372 = vsyncpa [#allocation3], 1

// kernel: schnet_forward.10
$region0: #{schnet_forward.10}
  #allocation0 [shape = 'u32[]', space=smem, size = 0x4, offset = 0x4, fixed_abs, tag = 'smem constant byte address 0x4 - core index']
  #allocation1 [shape = 'u32[144,128]{1,0:T(1,128)}', space=vmem, size = 0x12000, scoped, tag = 'internal scratch']
  #allocation2 [shape = 'f32[16,128]{1,0:T(8,128)}', space=vmem, size = 0x2000, scoped, tag = 'scratch operand']
  %s0 = inlined_call_operand.vmem [shape: f32[16,128], index: 0, kind: input, shape index: {}, may-alias: {0,12}]
  %s1 = inlined_call_operand.vmem [shape: bf16[16,16,128], index: 1, kind: input, shape index: {}]
  %s2 = inlined_call_operand.vmem [shape: f32[16,16], index: 2, kind: input, shape index: {}]
  %s3 = inlined_call_operand.vmem [shape: f32[16,128], index: 3, kind: input, shape index: {}]
  %s4 = inlined_call_operand.vmem [shape: bf16[128,128], index: 4, kind: input, shape index: {}]
  %s5 = inlined_call_operand.vmem [shape: f32[1,128], index: 5, kind: input, shape index: {}]
  %s6 = inlined_call_operand.vmem [shape: f32[128,128], index: 6, kind: input, shape index: {}]
  %s7 = inlined_call_operand.vmem [shape: f32[1,128], index: 7, kind: input, shape index: {}]
  %s8 = inlined_call_operand.vmem [shape: f32[128,128], index: 8, kind: input, shape index: {}]
  %s9 = inlined_call_operand.vmem [shape: f32[1,128], index: 9, kind: input, shape index: {}]
  %s10 = inlined_call_operand.vmem [shape: f32[128,128], index: 10, kind: input, shape index: {}]
  %s11 = inlined_call_operand.vmem [shape: f32[1,128], index: 11, kind: input, shape index: {}]
  %s12 = inlined_call_operand.vmem [shape: f32[16,128], index: 12, kind: output, shape index: {}, may-alias: {0,12}]
  %s13 = sld [smem:[#allocation0]]
  $region66: #{schnet_forward.10} parent=0
    _
  %s15 = ssub.s32 1, %s13
  %s16 = scalar_select 0, %s15, %s13
  // Predicated region
  $region2: #{schnet_forward.10} parent=0 // pred_check
    _
  $region3: #{schnet_forward.10} parent=0 // pred_check_branch
    %18 = sbr.rel (0) target = $region5
  $region4: #{schnet_forward.10} parent=0 // pred_region
    _
  $region5: #{schnet_forward.10} parent=0 // pred_fallthru
    _
  // Predicated region
  $region6: #{schnet_forward.10} parent=0 // pred_check
    _
  $region7: #{schnet_forward.10} parent=0 // pred_check_branch
    %20 = sbr.rel (0) target = $region9
  $region8: #{schnet_forward.10} parent=0 // pred_region
    _
  $region9: #{schnet_forward.10} parent=0 // pred_fallthru
    _
  // Predicated region
  $region10: #{schnet_forward.10} parent=0 // pred_check
    _
  $region11: #{schnet_forward.10} parent=0 // pred_check_branch
    %22 = sbr.rel (0) target = $region13
  $region12: #{schnet_forward.10} parent=0 // pred_region
    _
  $region13: #{schnet_forward.10} parent=0 // pred_fallthru
    _
  // Predicated region
  $region14: #{schnet_forward.10} parent=0 // pred_check
    _
  $region15: #{schnet_forward.10} parent=0 // pred_check_branch
    %24 = sbr.rel (0) target = $region17
  $region16: #{schnet_forward.10} parent=0 // pred_region
    _
  $region17: #{schnet_forward.10} parent=0 // pred_fallthru
    _
  // Predicated region
  $region18: #{schnet_forward.10} parent=0 // pred_check
    _
  $region19: #{schnet_forward.10} parent=0 // pred_check_branch
    %26 = sbr.rel (0) target = $region21
  $region20: #{schnet_forward.10} parent=0 // pred_region
    _
  $region21: #{schnet_forward.10} parent=0 // pred_fallthru
    _
  // Predicated region
  $region22: #{schnet_forward.10} parent=0 // pred_check
    _
  $region23: #{schnet_forward.10} parent=0 // pred_check_branch
    %28 = sbr.rel (0) target = $region25
  $region24: #{schnet_forward.10} parent=0 // pred_region
    _
  $region25: #{schnet_forward.10} parent=0 // pred_fallthru
    _
  // Predicated region
  $region26: #{schnet_forward.10} parent=0 // pred_check
    _
  $region27: #{schnet_forward.10} parent=0 // pred_check_branch
    %30 = sbr.rel (0) target = $region29
  $region28: #{schnet_forward.10} parent=0 // pred_region
    _
  $region29: #{schnet_forward.10} parent=0 // pred_fallthru
    _
  // Predicated region
  $region30: #{schnet_forward.10} parent=0 // pred_check
    _
  $region31: #{schnet_forward.10} parent=0 // pred_check_branch
    %32 = sbr.rel (0) target = $region33
  $region32: #{schnet_forward.10} parent=0 // pred_region
    _
  $region33: #{schnet_forward.10} parent=0 // pred_fallthru
    _
  // Predicated region
  $region34: #{schnet_forward.10} parent=0 // pred_check
    _
  $region35: #{schnet_forward.10} parent=0 // pred_check_branch
    %34 = sbr.rel (0) target = $region37
  $region36: #{schnet_forward.10} parent=0 // pred_region
    _
  $region37: #{schnet_forward.10} parent=0 // pred_fallthru
    _
  // Predicated region
  $region38: #{schnet_forward.10} parent=0 // pred_check
    _
  $region39: #{schnet_forward.10} parent=0 // pred_check_branch
    %36 = sbr.rel (0) target = $region41
  $region40: #{schnet_forward.10} parent=0 // pred_region
    _
  $region41: #{schnet_forward.10} parent=0 // pred_fallthru
    _
  // Predicated region
  $region42: #{schnet_forward.10} parent=0 // pred_check
    _
  $region43: #{schnet_forward.10} parent=0 // pred_check_branch
    %38 = sbr.rel (0) target = $region45
  $region44: #{schnet_forward.10} parent=0 // pred_region
    _
  $region45: #{schnet_forward.10} parent=0 // pred_fallthru
    _
  // Predicated region
  $region46: #{schnet_forward.10} parent=0 // pred_check
    _
  $region47: #{schnet_forward.10} parent=0 // pred_check_branch
    %40 = sbr.rel (0) target = $region49
  $region48: #{schnet_forward.10} parent=0 // pred_region
    _
  $region49: #{schnet_forward.10} parent=0 // pred_fallthru
    _
  %p42 = scmp.eq.s32.totalorder 0, 0
  // Predicated region
  $region50: #{schnet_forward.10} parent=0 // pred_check
    %p43 = pneg %p42
  $region51: #{schnet_forward.10} parent=0 // pred_check_branch
    %45 = sbr.rel (%p43) target = $region53
  $region52: #{schnet_forward.10} parent=0 // pred_region
    %46 = vst [vmem:[#allocation2] sm:$0xff] 0.0
    %47 = vst [vmem:[#allocation2 + $0x8] sm:$0xff] 0.0
  $region53: #{schnet_forward.10} parent=0 // pred_fallthru
    _
  %v48 = vld [vmem:[%s1] sm:$0xf]
  %v49 = vld [vmem:[%s1 + $0x4] sm:$0xf]
  %v50 = vld [vmem:[%s1 + $0x8] sm:$0xf]
  %v51 = vld [vmem:[%s1 + $0xc] sm:$0xf]
  %v52 = vld [vmem:[%s1 + $0x10] sm:$0xf]
  %v53 = vld [vmem:[%s1 + $0x14] sm:$0xf]
  %v54 = vld [vmem:[%s1 + $0x18] sm:$0xf]
  %v55 = vld [vmem:[%s1 + $0x1c] sm:$0xf]
  %v56 = vld [vmem:[%s1 + $0x20] sm:$0xf]
  %v57 = vld [vmem:[%s1 + $0x24] sm:$0xf]
  %v58 = vld [vmem:[%s1 + $0x28] sm:$0xf]
  %v59 = vld [vmem:[%s1 + $0x2c] sm:$0xf]
  %v60 = vld [vmem:[%s1 + $0x30] sm:$0xf]
  %v61 = vld [vmem:[%s1 + $0x34] sm:$0xf]
  %v62 = vld [vmem:[%s1 + $0x38] sm:$0xf]
  %v63 = vld [vmem:[%s1 + $0x3c] sm:$0xf]
  %v64 = vld [vmem:[%s1 + $0x40] sm:$0xf]
  %v65 = vld [vmem:[%s1 + $0x44] sm:$0xf]
  %v66 = vld [vmem:[%s1 + $0x48] sm:$0xf]
  %v67 = vld [vmem:[%s1 + $0x4c] sm:$0xf]
  %v68 = vld [vmem:[%s1 + $0x50] sm:$0xf]
  %v69 = vld [vmem:[%s1 + $0x54] sm:$0xf]
  %v70 = vld [vmem:[%s1 + $0x58] sm:$0xf]
  %v71 = vld [vmem:[%s1 + $0x5c] sm:$0xf]
  %v72 = vld [vmem:[%s1 + $0x60] sm:$0xf]
  %v73 = vld [vmem:[%s1 + $0x64] sm:$0xf]
  %v74 = vld [vmem:[%s1 + $0x68] sm:$0xf]
  %v75 = vld [vmem:[%s1 + $0x6c] sm:$0xf]
  %v76 = vld [vmem:[%s1 + $0x70] sm:$0xf]
  %v77 = vld [vmem:[%s1 + $0x74] sm:$0xf]
  %v78 = vld [vmem:[%s1 + $0x78] sm:$0xf]
  %v79 = vld [vmem:[%s1 + $0x7c] sm:$0xf]
  %v80 = vld [vmem:[%s4] sm:$0xf]
  %v81 = vld [vmem:[%s4 + $0x4] sm:$0xf]
  %v82 = vld [vmem:[%s4 + $0x8] sm:$0xf]
  %v83 = vld [vmem:[%s4 + $0xc] sm:$0xf]
  %v84 = vld [vmem:[%s4 + $0x10] sm:$0xf]
  %v85 = vld [vmem:[%s4 + $0x14] sm:$0xf]
  %v86 = vld [vmem:[%s4 + $0x18] sm:$0xf]
  %v87 = vld [vmem:[%s4 + $0x1c] sm:$0xf]
  %v88 = vld [vmem:[%s4 + $0x20] sm:$0xf]
  %v89 = vld [vmem:[%s4 + $0x24] sm:$0xf]
  %v90 = vld [vmem:[%s4 + $0x28] sm:$0xf]
  %v91 = vld [vmem:[%s4 + $0x2c] sm:$0xf]
  %v92 = vld [vmem:[%s4 + $0x30] sm:$0xf]
  %v93 = vld [vmem:[%s4 + $0x34] sm:$0xf]
  %v94 = vld [vmem:[%s4 + $0x38] sm:$0xf]
  %v95 = vld [vmem:[%s4 + $0x3c] sm:$0xf]
  %v96 = vld [vmem:[%s5] sm:$0x1]
  %v98 = vlaneseq
  %v99 = vshrl.u32 %v98, 7
  %v100 = vsub.s32 0, %v99
  %v101 = vrot.slane %v96, %v100
  %v135 = vunpack.c.l.b16 %v48
  %v136 = vunpack.c.l.b16 %v49
  %v137 = vunpack.c.l.b16 %v50
  %v138 = vunpack.c.l.b16 %v51
  %v139 = vunpack.c.l.b16 %v52
  %v140 = vunpack.c.l.b16 %v53
  %v141 = vunpack.c.l.b16 %v54
  %v142 = vunpack.c.l.b16 %v55
  %v143 = vunpack.c.l.b16 %v56
  %v144 = vunpack.c.l.b16 %v57
  %v145 = vunpack.c.l.b16 %v58
  %v146 = vunpack.c.l.b16 %v59
  %v147 = vunpack.c.l.b16 %v60
  %v148 = vunpack.c.l.b16 %v61
  %v149 = vunpack.c.l.b16 %v62
  %v150 = vunpack.c.l.b16 %v63
  %v151 = vunpack.c.l.b16 %v64
  %v152 = vunpack.c.l.b16 %v65
  %v153 = vunpack.c.l.b16 %v66
  %v154 = vunpack.c.l.b16 %v67
  %v155 = vunpack.c.l.b16 %v68
  %v156 = vunpack.c.l.b16 %v69
  %v157 = vunpack.c.l.b16 %v70
  %v158 = vunpack.c.l.b16 %v71
  %v159 = vunpack.c.l.b16 %v72
  %v160 = vunpack.c.l.b16 %v73
  %v161 = vunpack.c.l.b16 %v74
  %v162 = vunpack.c.l.b16 %v75
  %v163 = vunpack.c.l.b16 %v76
  %v164 = vunpack.c.l.b16 %v77
  %v165 = vunpack.c.l.b16 %v78
  %v166 = vunpack.c.l.b16 %v79
  %v167 = vpack.c.b16 %v136, %v135
  %v168 = vpack.c.b16 %v138, %v137
  %v169 = vpack.c.b16 %v140, %v139
  %v170 = vpack.c.b16 %v142, %v141
  %v171 = vpack.c.b16 %v144, %v143
  %v172 = vpack.c.b16 %v146, %v145
  %v173 = vpack.c.b16 %v148, %v147
  %v174 = vpack.c.b16 %v150, %v149
  %v175 = vpack.c.b16 %v152, %v151
  %v176 = vpack.c.b16 %v154, %v153
  %v177 = vpack.c.b16 %v156, %v155
  %v178 = vpack.c.b16 %v158, %v157
  %v179 = vpack.c.b16 %v160, %v159
  %v180 = vpack.c.b16 %v162, %v161
  %v181 = vpack.c.b16 %v164, %v163
  %v182 = vpack.c.b16 %v166, %v165
  %v215 = vunpack.c.l.b16 %v80
  %v216 = vunpack.c.l.b16 %v81
  %v217 = vunpack.c.l.b16 %v82
  %v218 = vunpack.c.l.b16 %v83
  %v219 = vunpack.c.l.b16 %v84
  %v220 = vunpack.c.l.b16 %v85
  %v221 = vunpack.c.l.b16 %v86
  %v222 = vunpack.c.l.b16 %v87
  %v223 = vunpack.c.l.b16 %v88
  %v224 = vunpack.c.l.b16 %v89
  %v225 = vunpack.c.l.b16 %v90
  %v226 = vunpack.c.l.b16 %v91
  %v227 = vunpack.c.l.b16 %v92
  %v228 = vunpack.c.l.b16 %v93
  %v229 = vunpack.c.l.b16 %v94
  %v230 = vunpack.c.l.b16 %v95
  %v231 = vpack.c.b16 %v216, %v215
  %v232 = vpack.c.b16 %v218, %v217
  %v233 = vpack.c.b16 %v220, %v219
  %v234 = vpack.c.b16 %v222, %v221
  %v235 = vpack.c.b16 %v224, %v223
  %v236 = vpack.c.b16 %v226, %v225
  %v237 = vpack.c.b16 %v228, %v227
  %v238 = vpack.c.b16 %v230, %v229
  %247 = vmatprep.subr.bf16.mxu0 0
  %248 = vmatpush1.bf16.msra.mxu0 %v238
  %249 = vmatprep.subr.bf16.mxu0 0
  %250 = vmatpush1.bf16.msra.mxu0 %v237
  %251 = vmatprep.subr.bf16.mxu0 0
  %252 = vmatpush1.bf16.msra.mxu0 %v236
  %253 = vmatprep.subr.bf16.mxu0 0
  %254 = vmatpush1.bf16.msra.mxu0 %v235
  %255 = vmatprep.subr.bf16.mxu0 0
  %256 = vmatpush1.bf16.msra.mxu0 %v234
  %257 = vmatprep.subr.bf16.mxu0 0
  %258 = vmatpush1.bf16.msra.mxu0 %v233
  %259 = vmatprep.subr.bf16.mxu0 0
  %260 = vmatpush1.bf16.msra.mxu0 %v232
  %261 = vmatprep.subr.bf16.mxu0 0
  %262 = vmatpush1.bf16.msra.mxu0 %v231
  %263 = vmatprep.subr.bf16.mxu0 0
  %264 = vmatpush2.bf16.msra.mxu0 0
  %265 = vmatprep.subr.bf16.mxu0 0
  %266 = vmatpush2.bf16.msra.mxu0 0
  %267 = vmatprep.subr.bf16.mxu0 0
  %268 = vmatpush2.bf16.msra.mxu0 0
  %269 = vmatprep.subr.bf16.mxu0 0
  %270 = vmatpush2.bf16.msra.mxu0 0
  %271 = vmatprep.subr.bf16.mxu0 0
  %272 = vmatpush2.bf16.msra.mxu0 0
  %273 = vmatprep.subr.bf16.mxu0 0
  %274 = vmatpush2.bf16.msra.mxu0 0
  %275 = vmatprep.subr.bf16.mxu0 0
  %276 = vmatpush2.bf16.msra.mxu0 0
  %277 = vmatprep.subr.bf16.mxu0 0
  %278 = vmatpush2.bf16.msra.mxu0 0
  %279 = vmatprep.mubr.bf16.mxu0 0
  %280 = vmatmul.mubr.bf16.gmra.mxu0 %v167
  %v281 = vpop.f32.mrf.mxu0
  %v282 = vadd.f32 %v101, %v281
  %v283 = vpop.f32.mrf.mxu0
  %v284 = vpop.f32.mrf.mxu0
  %v285 = vadd.f32 %v101, %v284
  %v286 = vpop.f32.mrf.mxu0
  %287 = vmatprep.mubr.bf16.mxu0 0
  %288 = vmatmul.mubr.bf16.gmra.mxu0 %v168
  %v289 = vpop.f32.mrf.mxu0
  %v290 = vadd.f32 %v101, %v289
  %v291 = vpop.f32.mrf.mxu0
  %v292 = vpop.f32.mrf.mxu0
  %v293 = vadd.f32 %v101, %v292
  %v294 = vpop.f32.mrf.mxu0
  %295 = vmatprep.mubr.bf16.mxu0 0
  %296 = vmatmul.mubr.bf16.gmra.mxu0 %v169
  %v297 = vpop.f32.mrf.mxu0
  %v298 = vadd.f32 %v101, %v297
  %v299 = vpop.f32.mrf.mxu0
  %v300 = vpop.f32.mrf.mxu0
  %v301 = vadd.f32 %v101, %v300
  %v302 = vpop.f32.mrf.mxu0
  %303 = vmatprep.mubr.bf16.mxu0 0
  %304 = vmatmul.mubr.bf16.gmra.mxu0 %v170
  %v305 = vpop.f32.mrf.mxu0
  %v306 = vadd.f32 %v101, %v305
  %v307 = vpop.f32.mrf.mxu0
  %v308 = vpop.f32.mrf.mxu0
  %v309 = vadd.f32 %v101, %v308
  %v310 = vpop.f32.mrf.mxu0
  %311 = vmatprep.mubr.bf16.mxu0 0
  %312 = vmatmul.mubr.bf16.gmra.mxu0 %v171
  %v313 = vpop.f32.mrf.mxu0
  %v314 = vadd.f32 %v101, %v313
  %v315 = vpop.f32.mrf.mxu0
  %v316 = vpop.f32.mrf.mxu0
  %v317 = vadd.f32 %v101, %v316
  %v318 = vpop.f32.mrf.mxu0
  %319 = vmatprep.mubr.bf16.mxu0 0
  %320 = vmatmul.mubr.bf16.gmra.mxu0 %v172
  %v321 = vpop.f32.mrf.mxu0
  %v322 = vadd.f32 %v101, %v321
  %v323 = vpop.f32.mrf.mxu0
  %v324 = vpop.f32.mrf.mxu0
  %v325 = vadd.f32 %v101, %v324
  %v326 = vpop.f32.mrf.mxu0
  %327 = vmatprep.mubr.bf16.mxu0 0
  %328 = vmatmul.mubr.bf16.gmra.mxu0 %v173
  %v329 = vpop.f32.mrf.mxu0
  %v330 = vadd.f32 %v101, %v329
  %v331 = vpop.f32.mrf.mxu0
  %v332 = vpop.f32.mrf.mxu0
  %v333 = vadd.f32 %v101, %v332
  %v334 = vpop.f32.mrf.mxu0
  %335 = vmatprep.mubr.bf16.mxu0 0
  %336 = vmatmul.mubr.bf16.gmra.mxu0 %v174
  %v337 = vpop.f32.mrf.mxu0
  %v338 = vadd.f32 %v101, %v337
  %v339 = vpop.f32.mrf.mxu0
  %v340 = vpop.f32.mrf.mxu0
  %v341 = vadd.f32 %v101, %v340
  %v342 = vpop.f32.mrf.mxu0
  %343 = vmatprep.mubr.bf16.mxu0 0
  %344 = vmatmul.mubr.bf16.gmra.mxu0 %v175
  %v345 = vpop.f32.mrf.mxu0
  %v346 = vadd.f32 %v101, %v345
  %v347 = vpop.f32.mrf.mxu0
  %v348 = vpop.f32.mrf.mxu0
  %v349 = vadd.f32 %v101, %v348
  %v350 = vpop.f32.mrf.mxu0
  %351 = vmatprep.mubr.bf16.mxu0 0
  %352 = vmatmul.mubr.bf16.gmra.mxu0 %v176
  %v353 = vpop.f32.mrf.mxu0
  %v354 = vadd.f32 %v101, %v353
  %v355 = vpop.f32.mrf.mxu0
  %v356 = vpop.f32.mrf.mxu0
  %v357 = vadd.f32 %v101, %v356
  %v358 = vpop.f32.mrf.mxu0
  %359 = vmatprep.mubr.bf16.mxu0 0
  %360 = vmatmul.mubr.bf16.gmra.mxu0 %v177
  %v361 = vpop.f32.mrf.mxu0
  %v362 = vadd.f32 %v101, %v361
  %v363 = vpop.f32.mrf.mxu0
  %v364 = vpop.f32.mrf.mxu0
  %v365 = vadd.f32 %v101, %v364
  %v366 = vpop.f32.mrf.mxu0
  %367 = vmatprep.mubr.bf16.mxu0 0
  %368 = vmatmul.mubr.bf16.gmra.mxu0 %v178
  %v369 = vpop.f32.mrf.mxu0
  %v370 = vadd.f32 %v101, %v369
  %v371 = vpop.f32.mrf.mxu0
  %v372 = vpop.f32.mrf.mxu0
  %v373 = vadd.f32 %v101, %v372
  %v374 = vpop.f32.mrf.mxu0
  %375 = vmatprep.mubr.bf16.mxu0 0
  %376 = vmatmul.mubr.bf16.gmra.mxu0 %v179
  %v377 = vpop.f32.mrf.mxu0
  %v378 = vadd.f32 %v101, %v377
  %v379 = vpop.f32.mrf.mxu0
  %v380 = vpop.f32.mrf.mxu0
  %v381 = vadd.f32 %v101, %v380
  %v382 = vpop.f32.mrf.mxu0
  %383 = vmatprep.mubr.bf16.mxu0 0
  %384 = vmatmul.mubr.bf16.gmra.mxu0 %v180
  %v385 = vpop.f32.mrf.mxu0
  %v386 = vadd.f32 %v101, %v385
  %v387 = vpop.f32.mrf.mxu0
  %v388 = vpop.f32.mrf.mxu0
  %v389 = vadd.f32 %v101, %v388
  %v390 = vpop.f32.mrf.mxu0
  %391 = vmatprep.mubr.bf16.mxu0 0
  %392 = vmatmul.mubr.bf16.gmra.mxu0 %v181
  %v393 = vpop.f32.mrf.mxu0
  %v394 = vadd.f32 %v101, %v393
  %v395 = vpop.f32.mrf.mxu0
  %v396 = vpop.f32.mrf.mxu0
  %v397 = vadd.f32 %v101, %v396
  %v398 = vpop.f32.mrf.mxu0
  %399 = vmatprep.mubr.bf16.mxu0 0
  %400 = vmatmul.mubr.bf16.gmra.mxu0 %v182
  %v401 = vpop.f32.mrf.mxu0
  %v402 = vadd.f32 %v101, %v401
  %v403 = vpop.f32.mrf.mxu0
  %v404 = vpop.f32.mrf.mxu0
  %v405 = vadd.f32 %v101, %v404
  %v406 = vpop.f32.mrf.mxu0
  %407 = vdwg.mxu0
  %v408 = vmax.f32 %v282, 0.0
  %v409 = vmax.f32 %v285, 0.0
  %v410 = vmax.f32 %v290, 0.0
  %v411 = vmax.f32 %v293, 0.0
  %v412 = vmax.f32 %v298, 0.0
  %v413 = vmax.f32 %v301, 0.0
  %v414 = vmax.f32 %v306, 0.0
  %v415 = vmax.f32 %v309, 0.0
  %v416 = vmax.f32 %v314, 0.0
  %v417 = vmax.f32 %v317, 0.0
  %v418 = vmax.f32 %v322, 0.0
  %v419 = vmax.f32 %v325, 0.0
  %v420 = vmax.f32 %v330, 0.0
  %v421 = vmax.f32 %v333, 0.0
  %v422 = vmax.f32 %v338, 0.0
  %v423 = vmax.f32 %v341, 0.0
  %v424 = vmax.f32 %v346, 0.0
  %v425 = vmax.f32 %v349, 0.0
  %v426 = vmax.f32 %v354, 0.0
  %v427 = vmax.f32 %v357, 0.0
  %v428 = vmax.f32 %v362, 0.0
  %v429 = vmax.f32 %v365, 0.0
  %v430 = vmax.f32 %v370, 0.0
  %v431 = vmax.f32 %v373, 0.0
  %v432 = vmax.f32 %v378, 0.0
  %v433 = vmax.f32 %v381, 0.0
  %v434 = vmax.f32 %v386, 0.0
  %v435 = vmax.f32 %v389, 0.0
  %v436 = vmax.f32 %v394, 0.0
  %v437 = vmax.f32 %v397, 0.0
  %v438 = vmax.f32 %v402, 0.0
  %v439 = vmax.f32 %v405, 0.0
  %v440 = vand.u32 2147483647, %v282
  %v441 = vand.u32 2147483647, %v285
  %v442 = vand.u32 2147483647, %v290
  %v443 = vand.u32 2147483647, %v293
  %v444 = vand.u32 2147483647, %v298
  %v445 = vand.u32 2147483647, %v301
  %v446 = vand.u32 2147483647, %v306
  %v447 = vand.u32 2147483647, %v309
  %v448 = vand.u32 2147483647, %v314
  %v449 = vand.u32 2147483647, %v317
  %v450 = vand.u32 2147483647, %v322
  %v451 = vand.u32 2147483647, %v325
  %v452 = vand.u32 2147483647, %v330
  %v453 = vand.u32 2147483647, %v333
  %v454 = vand.u32 2147483647, %v338
  %v455 = vand.u32 2147483647, %v341
  %v456 = vand.u32 2147483647, %v346
  %v457 = vand.u32 2147483647, %v349
  %v458 = vand.u32 2147483647, %v354
  %v459 = vand.u32 2147483647, %v357
  %v460 = vand.u32 2147483647, %v362
  %v461 = vand.u32 2147483647, %v365
  %v462 = vand.u32 2147483647, %v370
  %v463 = vand.u32 2147483647, %v373
  %v464 = vand.u32 2147483647, %v378
  %v465 = vand.u32 2147483647, %v381
  %v466 = vand.u32 2147483647, %v386
  %v467 = vand.u32 2147483647, %v389
  %v468 = vand.u32 2147483647, %v394
  %v469 = vand.u32 2147483647, %v397
  %v470 = vand.u32 2147483647, %v402
  %v471 = vand.u32 2147483647, %v405
  %v472 = vsub.f32 0.0, %v440
  %v473 = vsub.f32 0.0, %v441
  %v474 = vsub.f32 0.0, %v442
  %v475 = vsub.f32 0.0, %v443
  %v476 = vsub.f32 0.0, %v444
  %v477 = vsub.f32 0.0, %v445
  %v478 = vsub.f32 0.0, %v446
  %v479 = vsub.f32 0.0, %v447
  %v480 = vsub.f32 0.0, %v448
  %v481 = vsub.f32 0.0, %v449
  %v482 = vsub.f32 0.0, %v450
  %v483 = vsub.f32 0.0, %v451
  %v484 = vsub.f32 0.0, %v452
  %v485 = vsub.f32 0.0, %v453
  %v486 = vsub.f32 0.0, %v454
  %v487 = vsub.f32 0.0, %v455
  %v488 = vsub.f32 0.0, %v456
  %v489 = vsub.f32 0.0, %v457
  %v490 = vsub.f32 0.0, %v458
  %v491 = vsub.f32 0.0, %v459
  %v492 = vsub.f32 0.0, %v460
  %v493 = vsub.f32 0.0, %v461
  %v494 = vsub.f32 0.0, %v462
  %v495 = vsub.f32 0.0, %v463
  %v496 = vsub.f32 0.0, %v464
  %v497 = vsub.f32 0.0, %v465
  %v498 = vsub.f32 0.0, %v466
  %v499 = vsub.f32 0.0, %v467
  %v500 = vsub.f32 0.0, %v468
  %v501 = vsub.f32 0.0, %v469
  %v502 = vsub.f32 0.0, %v470
  %v503 = vsub.f32 0.0, %v471
  %v504 = vmul.f32 %v472, 1.442695
  %v505 = vpow.pop %v504
  %v506 = vmul.f32 %v473, 1.442695
  %v507 = vpow.pop %v506
  %v508 = vmul.f32 %v474, 1.442695
  %v509 = vpow.pop %v508
  %v510 = vmul.f32 %v475, 1.442695
  %v511 = vpow.pop %v510
  %v512 = vmul.f32 %v476, 1.442695
  %v513 = vpow.pop %v512
  %v514 = vmul.f32 %v477, 1.442695
  %v515 = vpow.pop %v514
  %v516 = vmul.f32 %v478, 1.442695
  %v517 = vpow.pop %v516
  %v518 = vmul.f32 %v479, 1.442695
  %v519 = vpow.pop %v518
  %v520 = vmul.f32 %v480, 1.442695
  %v521 = vpow.pop %v520
  %v522 = vmul.f32 %v481, 1.442695
  %v523 = vpow.pop %v522
  %v524 = vmul.f32 %v482, 1.442695
  %v525 = vpow.pop %v524
  %v526 = vmul.f32 %v483, 1.442695
  %v527 = vpow.pop %v526
  %v528 = vmul.f32 %v484, 1.442695
  %v529 = vpow.pop %v528
  %v530 = vmul.f32 %v485, 1.442695
  %v531 = vpow.pop %v530
  %v532 = vmul.f32 %v486, 1.442695
  %v533 = vpow.pop %v532
  %v534 = vmul.f32 %v487, 1.442695
  %v535 = vpow.pop %v534
  %v536 = vmul.f32 %v488, 1.442695
  %v537 = vpow.pop %v536
  %v538 = vmul.f32 %v489, 1.442695
  %v539 = vpow.pop %v538
  %v540 = vmul.f32 %v490, 1.442695
  %v541 = vpow.pop %v540
  %v542 = vmul.f32 %v491, 1.442695
  %v543 = vpow.pop %v542
  %v544 = vmul.f32 %v492, 1.442695
  %v545 = vpow.pop %v544
  %v546 = vmul.f32 %v493, 1.442695
  %v547 = vpow.pop %v546
  %v548 = vmul.f32 %v494, 1.442695
  %v549 = vpow.pop %v548
  %v550 = vmul.f32 %v495, 1.442695
  %v551 = vpow.pop %v550
  %v552 = vmul.f32 %v496, 1.442695
  %v553 = vpow.pop %v552
  %v554 = vmul.f32 %v497, 1.442695
  %v555 = vpow.pop %v554
  %v556 = vmul.f32 %v498, 1.442695
  %v557 = vpow.pop %v556
  %v558 = vmul.f32 %v499, 1.442695
  %v559 = vpow.pop %v558
  %v560 = vmul.f32 %v500, 1.442695
  %v561 = vpow.pop %v560
  %v562 = vmul.f32 %v501, 1.442695
  %v563 = vpow.pop %v562
  %v564 = vmul.f32 %v502, 1.442695
  %v565 = vpow.pop %v564
  %v566 = vmul.f32 %v503, 1.442695
  %v567 = vpow.pop %v566
  %v568 = vadd.f32 %v505, 1.0
  %v569 = vadd.f32 %v507, 1.0
  %v570 = vadd.f32 %v509, 1.0
  %v571 = vadd.f32 %v511, 1.0
  %v572 = vadd.f32 %v513, 1.0
  %v573 = vadd.f32 %v515, 1.0
  %v574 = vadd.f32 %v517, 1.0
  %v575 = vadd.f32 %v519, 1.0
  %v576 = vadd.f32 %v521, 1.0
  %v577 = vadd.f32 %v523, 1.0
  %v578 = vadd.f32 %v525, 1.0
  %v579 = vadd.f32 %v527, 1.0
  %v580 = vadd.f32 %v529, 1.0
  %v581 = vadd.f32 %v531, 1.0
  %v582 = vadd.f32 %v533, 1.0
  %v583 = vadd.f32 %v535, 1.0
  %v584 = vadd.f32 %v537, 1.0
  %v585 = vadd.f32 %v539, 1.0
  %v586 = vadd.f32 %v541, 1.0
  %v587 = vadd.f32 %v543, 1.0
  %v588 = vadd.f32 %v545, 1.0
  %v589 = vadd.f32 %v547, 1.0
  %v590 = vadd.f32 %v549, 1.0
  %v591 = vadd.f32 %v551, 1.0
  %v592 = vadd.f32 %v553, 1.0
  %v593 = vadd.f32 %v555, 1.0
  %v594 = vadd.f32 %v557, 1.0
  %v595 = vadd.f32 %v559, 1.0
  %v596 = vadd.f32 %v561, 1.0
  %v597 = vadd.f32 %v563, 1.0
  %v598 = vadd.f32 %v565, 1.0
  %v599 = vadd.f32 %v567, 1.0
  %v600 = vlog2.pop %v568
  %v601 = vmul.f32 %v600, 0.6931472
  %v602 = vlog2.pop %v569
  %v603 = vmul.f32 %v602, 0.6931472
  %v604 = vlog2.pop %v570
  %v605 = vmul.f32 %v604, 0.6931472
  %v606 = vlog2.pop %v571
  %v607 = vmul.f32 %v606, 0.6931472
  %v608 = vlog2.pop %v572
  %v609 = vmul.f32 %v608, 0.6931472
  %v610 = vlog2.pop %v573
  %v611 = vmul.f32 %v610, 0.6931472
  %v612 = vlog2.pop %v574
  %v613 = vmul.f32 %v612, 0.6931472
  %v614 = vlog2.pop %v575
  %v615 = vmul.f32 %v614, 0.6931472
  %v616 = vlog2.pop %v576
  %v617 = vmul.f32 %v616, 0.6931472
  %v618 = vlog2.pop %v577
  %v619 = vmul.f32 %v618, 0.6931472
  %v620 = vlog2.pop %v578
  %v621 = vmul.f32 %v620, 0.6931472
  %v622 = vlog2.pop %v579
  %v623 = vmul.f32 %v622, 0.6931472
  %v624 = vlog2.pop %v580
  %v625 = vmul.f32 %v624, 0.6931472
  %v626 = vlog2.pop %v581
  %v627 = vmul.f32 %v626, 0.6931472
  %v628 = vlog2.pop %v582
  %v629 = vmul.f32 %v628, 0.6931472
  %v630 = vlog2.pop %v583
  %v631 = vmul.f32 %v630, 0.6931472
  %v632 = vlog2.pop %v584
  %v633 = vmul.f32 %v632, 0.6931472
  %v634 = vlog2.pop %v585
  %v635 = vmul.f32 %v634, 0.6931472
  %v636 = vlog2.pop %v586
  %v637 = vmul.f32 %v636, 0.6931472
  %v638 = vlog2.pop %v587
  %v639 = vmul.f32 %v638, 0.6931472
  %v640 = vlog2.pop %v588
  %v641 = vmul.f32 %v640, 0.6931472
  %v642 = vlog2.pop %v589
  %v643 = vmul.f32 %v642, 0.6931472
  %v644 = vlog2.pop %v590
  %v645 = vmul.f32 %v644, 0.6931472
  %v646 = vlog2.pop %v591
  %v647 = vmul.f32 %v646, 0.6931472
  %v648 = vlog2.pop %v592
  %v649 = vmul.f32 %v648, 0.6931472
  %v650 = vlog2.pop %v593
  %v651 = vmul.f32 %v650, 0.6931472
  %v652 = vlog2.pop %v594
  %v653 = vmul.f32 %v652, 0.6931472
  %v654 = vlog2.pop %v595
  %v655 = vmul.f32 %v654, 0.6931472
  %v656 = vlog2.pop %v596
  %v657 = vmul.f32 %v656, 0.6931472
  %v658 = vlog2.pop %v597
  %v659 = vmul.f32 %v658, 0.6931472
  %v660 = vlog2.pop %v598
  %v661 = vmul.f32 %v660, 0.6931472
  %v662 = vlog2.pop %v599
  %v663 = vmul.f32 %v662, 0.6931472
  %v664 = vadd.f32 %v408, %v601
  %v665 = vadd.f32 %v409, %v603
  %v666 = vadd.f32 %v410, %v605
  %v667 = vadd.f32 %v411, %v607
  %v668 = vadd.f32 %v412, %v609
  %v669 = vadd.f32 %v413, %v611
  %v670 = vadd.f32 %v414, %v613
  %v671 = vadd.f32 %v415, %v615
  %v672 = vadd.f32 %v416, %v617
  %v673 = vadd.f32 %v417, %v619
  %v674 = vadd.f32 %v418, %v621
  %v675 = vadd.f32 %v419, %v623
  %v676 = vadd.f32 %v420, %v625
  %v677 = vadd.f32 %v421, %v627
  %v678 = vadd.f32 %v422, %v629
  %v679 = vadd.f32 %v423, %v631
  %v680 = vadd.f32 %v424, %v633
  %v681 = vadd.f32 %v425, %v635
  %v682 = vadd.f32 %v426, %v637
  %v683 = vadd.f32 %v427, %v639
  %v684 = vadd.f32 %v428, %v641
  %v685 = vadd.f32 %v429, %v643
  %v686 = vadd.f32 %v430, %v645
  %v687 = vadd.f32 %v431, %v647
  %v688 = vadd.f32 %v432, %v649
  %v689 = vadd.f32 %v433, %v651
  %v690 = vadd.f32 %v434, %v653
  %v691 = vadd.f32 %v435, %v655
  %v692 = vadd.f32 %v436, %v657
  %v693 = vadd.f32 %v437, %v659
  %v694 = vadd.f32 %v438, %v661
  %v695 = vadd.f32 %v439, %v663
  %v696 = vsub.f32 %v664, 0.6931472
  %v697 = vsub.f32 %v665, 0.6931472
  %v698 = vsub.f32 %v666, 0.6931472
  %v699 = vsub.f32 %v667, 0.6931472
  %v700 = vsub.f32 %v668, 0.6931472
  %v701 = vsub.f32 %v669, 0.6931472
  %v702 = vsub.f32 %v670, 0.6931472
  %v703 = vsub.f32 %v671, 0.6931472
  %v704 = vsub.f32 %v672, 0.6931472
  %v705 = vsub.f32 %v673, 0.6931472
  %v706 = vsub.f32 %v674, 0.6931472
  %v707 = vsub.f32 %v675, 0.6931472
  %v708 = vsub.f32 %v676, 0.6931472
  %v709 = vsub.f32 %v677, 0.6931472
  %v710 = vsub.f32 %v678, 0.6931472
  %v711 = vsub.f32 %v679, 0.6931472
  %v712 = vsub.f32 %v680, 0.6931472
  %v713 = vsub.f32 %v681, 0.6931472
  %v714 = vsub.f32 %v682, 0.6931472
  %v715 = vsub.f32 %v683, 0.6931472
  %v716 = vsub.f32 %v684, 0.6931472
  %v717 = vsub.f32 %v685, 0.6931472
  %v718 = vsub.f32 %v686, 0.6931472
  %v719 = vsub.f32 %v687, 0.6931472
  %v720 = vsub.f32 %v688, 0.6931472
  %v721 = vsub.f32 %v689, 0.6931472
  %v722 = vsub.f32 %v690, 0.6931472
  %v723 = vsub.f32 %v691, 0.6931472
  %v724 = vsub.f32 %v692, 0.6931472
  %v725 = vsub.f32 %v693, 0.6931472
  %v726 = vsub.f32 %v694, 0.6931472
  %v727 = vsub.f32 %v695, 0.6931472
  %v728 = vld [vmem:[%s6] sm:$0xff]
  %v729 = vld [vmem:[%s6 + $0x8] sm:$0xff]
  %v730 = vld [vmem:[%s6 + $0x10] sm:$0xff]
  %v731 = vld [vmem:[%s6 + $0x18] sm:$0xff]
  %v732 = vld [vmem:[%s6 + $0x20] sm:$0xff]
  %v733 = vld [vmem:[%s6 + $0x28] sm:$0xff]
  %v734 = vld [vmem:[%s6 + $0x30] sm:$0xff]
  %v735 = vld [vmem:[%s6 + $0x38] sm:$0xff]
  %v736 = vld [vmem:[%s6 + $0x40] sm:$0xff]
  %v737 = vld [vmem:[%s6 + $0x48] sm:$0xff]
  %v738 = vld [vmem:[%s6 + $0x50] sm:$0xff]
  %v739 = vld [vmem:[%s6 + $0x58] sm:$0xff]
  %v740 = vld [vmem:[%s6 + $0x60] sm:$0xff]
  %v741 = vld [vmem:[%s6 + $0x68] sm:$0xff]
  %v742 = vld [vmem:[%s6 + $0x70] sm:$0xff]
  %v743 = vld [vmem:[%s6 + $0x78] sm:$0xff]
  %v744 = vld [vmem:[%s7] sm:$0x1]
  %v746 = vlaneseq
  %v747 = vshrl.u32 %v746, 7
  %v748 = vsub.s32 0, %v747
  %v749 = vrot.slane %v744, %v748
  %751 = vmatprep.subr.mxu0 0.0
  %752 = vmatpush1.msra.mxu0 %v743
  %753 = vmatprep.subr.mxu0 0.0
  %754 = vmatpush1.msra.mxu0 %v742
  %755 = vmatprep.subr.mxu0 0.0
  %756 = vmatpush1.msra.mxu0 %v741
  %757 = vmatprep.subr.mxu0 0.0
  %758 = vmatpush1.msra.mxu0 %v740
  %759 = vmatprep.subr.mxu0 0.0
  %760 = vmatpush1.msra.mxu0 %v739
  %761 = vmatprep.subr.mxu0 0.0
  %762 = vmatpush1.msra.mxu0 %v738
  %763 = vmatprep.subr.mxu0 0.0
  %764 = vmatpush1.msra.mxu0 %v737
  %765 = vmatprep.subr.mxu0 0.0
  %766 = vmatpush1.msra.mxu0 %v736
  %767 = vmatprep.subr.mxu0 0.0
  %768 = vmatpush1.msra.mxu0 %v735
  %769 = vmatprep.subr.mxu0 0.0
  %770 = vmatpush1.msra.mxu0 %v734
  %771 = vmatprep.subr.mxu0 0.0
  %772 = vmatpush1.msra.mxu0 %v733
  %773 = vmatprep.subr.mxu0 0.0
  %774 = vmatpush1.msra.mxu0 %v732
  %775 = vmatprep.subr.mxu0 0.0
  %776 = vmatpush1.msra.mxu0 %v731
  %777 = vmatprep.subr.mxu0 0.0
  %778 = vmatpush1.msra.mxu0 %v730
  %779 = vmatprep.subr.mxu0 0.0
  %780 = vmatpush1.msra.mxu0 %v729
  %781 = vmatprep.subr.mxu0 0.0
  %782 = vmatpush1.msra.mxu0 %v728
  %783 = vmatprep.subr.mxu0 0.0
  %784 = vmatpush2.msra.mxu0 0.0
  %785 = vmatprep.subr.mxu0 0.0
  %786 = vmatpush2.msra.mxu0 0.0
  %787 = vmatprep.subr.mxu0 0.0
  %788 = vmatpush2.msra.mxu0 0.0
  %789 = vmatprep.subr.mxu0 0.0
  %790 = vmatpush2.msra.mxu0 0.0
  %791 = vmatprep.subr.mxu0 0.0
  %792 = vmatpush2.msra.mxu0 0.0
  %793 = vmatprep.subr.mxu0 0.0
  %794 = vmatpush2.msra.mxu0 0.0
  %795 = vmatprep.subr.mxu0 0.0
  %796 = vmatpush2.msra.mxu0 0.0
  %797 = vmatprep.subr.mxu0 0.0
  %798 = vmatpush2.msra.mxu0 0.0
  %799 = vmatprep.subr.mxu0 0.0
  %800 = vmatpush2.msra.mxu0 0.0
  %801 = vmatprep.subr.mxu0 0.0
  %802 = vmatpush2.msra.mxu0 0.0
  %803 = vmatprep.subr.mxu0 0.0
  %804 = vmatpush2.msra.mxu0 0.0
  %805 = vmatprep.subr.mxu0 0.0
  %806 = vmatpush2.msra.mxu0 0.0
  %807 = vmatprep.subr.mxu0 0.0
  %808 = vmatpush2.msra.mxu0 0.0
  %809 = vmatprep.subr.mxu0 0.0
  %810 = vmatpush2.msra.mxu0 0.0
  %811 = vmatprep.subr.mxu0 0.0
  %812 = vmatpush2.msra.mxu0 0.0
  %813 = vmatprep.subr.mxu0 0.0
  %814 = vmatpush2.msra.mxu0 0.0
  %815 = vmatprep.mubr.f32.mxu0 0.0
  %816 = vmatmul.mubr.f32.gmra.mxu0 %v696
  %v817 = vpop.f32.mrf.mxu0
  %v818 = vadd.f32 %v749, %v817
  %v819 = vpop.f32.mrf.mxu0
  %820 = vmatprep.mubr.f32.mxu0 0.0
  %821 = vmatmul.mubr.f32.gmra.mxu0 %v697
  %v822 = vpop.f32.mrf.mxu0
  %v823 = vadd.f32 %v749, %v822
  %v824 = vpop.f32.mrf.mxu0
  %825 = vmatprep.mubr.f32.mxu0 0.0
  %826 = vmatmul.mubr.f32.gmra.mxu0 %v698
  %v827 = vpop.f32.mrf.mxu0
  %v828 = vadd.f32 %v749, %v827
  %v829 = vpop.f32.mrf.mxu0
  %830 = vmatprep.mubr.f32.mxu0 0.0
  %831 = vmatmul.mubr.f32.gmra.mxu0 %v699
  %v832 = vpop.f32.mrf.mxu0
  %v833 = vadd.f32 %v749, %v832
  %v834 = vpop.f32.mrf.mxu0
  %835 = vmatprep.mubr.f32.mxu0 0.0
  %836 = vmatmul.mubr.f32.gmra.mxu0 %v700
  %v837 = vpop.f32.mrf.mxu0
  %v838 = vadd.f32 %v749, %v837
  %v839 = vpop.f32.mrf.mxu0
  %840 = vmatprep.mubr.f32.mxu0 0.0
  %841 = vmatmul.mubr.f32.gmra.mxu0 %v701
  %v842 = vpop.f32.mrf.mxu0
  %v843 = vadd.f32 %v749, %v842
  %v844 = vpop.f32.mrf.mxu0
  %845 = vmatprep.mubr.f32.mxu0 0.0
  %846 = vmatmul.mubr.f32.gmra.mxu0 %v702
  %v847 = vpop.f32.mrf.mxu0
  %v848 = vadd.f32 %v749, %v847
  %v849 = vpop.f32.mrf.mxu0
  %850 = vmatprep.mubr.f32.mxu0 0.0
  %851 = vmatmul.mubr.f32.gmra.mxu0 %v703
  %v852 = vpop.f32.mrf.mxu0
  %v853 = vadd.f32 %v749, %v852
  %v854 = vpop.f32.mrf.mxu0
  %855 = vmatprep.mubr.f32.mxu0 0.0
  %856 = vmatmul.mubr.f32.gmra.mxu0 %v704
  %v857 = vpop.f32.mrf.mxu0
  %v858 = vadd.f32 %v749, %v857
  %v859 = vpop.f32.mrf.mxu0
  %860 = vmatprep.mubr.f32.mxu0 0.0
  %861 = vmatmul.mubr.f32.gmra.mxu0 %v705
  %v862 = vpop.f32.mrf.mxu0
  %v863 = vadd.f32 %v749, %v862
  %v864 = vpop.f32.mrf.mxu0
  %865 = vmatprep.mubr.f32.mxu0 0.0
  %866 = vmatmul.mubr.f32.gmra.mxu0 %v706
  %v867 = vpop.f32.mrf.mxu0
  %v868 = vadd.f32 %v749, %v867
  %v869 = vpop.f32.mrf.mxu0
  %870 = vmatprep.mubr.f32.mxu0 0.0
  %871 = vmatmul.mubr.f32.gmra.mxu0 %v707
  %v872 = vpop.f32.mrf.mxu0
  %v873 = vadd.f32 %v749, %v872
  %v874 = vpop.f32.mrf.mxu0
  %875 = vmatprep.mubr.f32.mxu0 0.0
  %876 = vmatmul.mubr.f32.gmra.mxu0 %v708
  %v877 = vpop.f32.mrf.mxu0
  %v878 = vadd.f32 %v749, %v877
  %v879 = vpop.f32.mrf.mxu0
  %880 = vmatprep.mubr.f32.mxu0 0.0
  %881 = vmatmul.mubr.f32.gmra.mxu0 %v709
  %v882 = vpop.f32.mrf.mxu0
  %v883 = vadd.f32 %v749, %v882
  %v884 = vpop.f32.mrf.mxu0
  %885 = vmatprep.mubr.f32.mxu0 0.0
  %886 = vmatmul.mubr.f32.gmra.mxu0 %v710
  %v887 = vpop.f32.mrf.mxu0
  %v888 = vadd.f32 %v749, %v887
  %v889 = vpop.f32.mrf.mxu0
  %890 = vmatprep.mubr.f32.mxu0 0.0
  %891 = vmatmul.mubr.f32.gmra.mxu0 %v711
  %v892 = vpop.f32.mrf.mxu0
  %v893 = vadd.f32 %v749, %v892
  %v894 = vpop.f32.mrf.mxu0
  %895 = vmatprep.mubr.f32.mxu0 0.0
  %896 = vmatmul.mubr.f32.gmra.mxu0 %v712
  %v897 = vpop.f32.mrf.mxu0
  %v898 = vadd.f32 %v749, %v897
  %v899 = vpop.f32.mrf.mxu0
  %900 = vmatprep.mubr.f32.mxu0 0.0
  %901 = vmatmul.mubr.f32.gmra.mxu0 %v713
  %v902 = vpop.f32.mrf.mxu0
  %v903 = vadd.f32 %v749, %v902
  %v904 = vpop.f32.mrf.mxu0
  %905 = vmatprep.mubr.f32.mxu0 0.0
  %906 = vmatmul.mubr.f32.gmra.mxu0 %v714
  %v907 = vpop.f32.mrf.mxu0
  %v908 = vadd.f32 %v749, %v907
  %v909 = vpop.f32.mrf.mxu0
  %910 = vmatprep.mubr.f32.mxu0 0.0
  %911 = vmatmul.mubr.f32.gmra.mxu0 %v715
  %v912 = vpop.f32.mrf.mxu0
  %v913 = vadd.f32 %v749, %v912
  %v914 = vpop.f32.mrf.mxu0
  %915 = vmatprep.mubr.f32.mxu0 0.0
  %916 = vmatmul.mubr.f32.gmra.mxu0 %v716
  %v917 = vpop.f32.mrf.mxu0
  %v918 = vadd.f32 %v749, %v917
  %v919 = vpop.f32.mrf.mxu0
  %920 = vmatprep.mubr.f32.mxu0 0.0
  %921 = vmatmul.mubr.f32.gmra.mxu0 %v717
  %v922 = vpop.f32.mrf.mxu0
  %v923 = vadd.f32 %v749, %v922
  %v924 = vpop.f32.mrf.mxu0
  %925 = vmatprep.mubr.f32.mxu0 0.0
  %926 = vmatmul.mubr.f32.gmra.mxu0 %v718
  %v927 = vpop.f32.mrf.mxu0
  %v928 = vadd.f32 %v749, %v927
  %v929 = vpop.f32.mrf.mxu0
  %930 = vmatprep.mubr.f32.mxu0 0.0
  %931 = vmatmul.mubr.f32.gmra.mxu0 %v719
  %v932 = vpop.f32.mrf.mxu0
  %v933 = vadd.f32 %v749, %v932
  %v934 = vpop.f32.mrf.mxu0
  %935 = vmatprep.mubr.f32.mxu0 0.0
  %936 = vmatmul.mubr.f32.gmra.mxu0 %v720
  %v937 = vpop.f32.mrf.mxu0
  %v938 = vadd.f32 %v749, %v937
  %v939 = vpop.f32.mrf.mxu0
  %940 = vmatprep.mubr.f32.mxu0 0.0
  %941 = vmatmul.mubr.f32.gmra.mxu0 %v721
  %v942 = vpop.f32.mrf.mxu0
  %v943 = vadd.f32 %v749, %v942
  %v944 = vpop.f32.mrf.mxu0
  %945 = vmatprep.mubr.f32.mxu0 0.0
  %946 = vmatmul.mubr.f32.gmra.mxu0 %v722
  %v947 = vpop.f32.mrf.mxu0
  %v948 = vadd.f32 %v749, %v947
  %v949 = vpop.f32.mrf.mxu0
  %950 = vmatprep.mubr.f32.mxu0 0.0
  %951 = vmatmul.mubr.f32.gmra.mxu0 %v723
  %v952 = vpop.f32.mrf.mxu0
  %v953 = vadd.f32 %v749, %v952
  %v954 = vpop.f32.mrf.mxu0
  %955 = vmatprep.mubr.f32.mxu0 0.0
  %956 = vmatmul.mubr.f32.gmra.mxu0 %v724
  %v957 = vpop.f32.mrf.mxu0
  %v958 = vadd.f32 %v749, %v957
  %v959 = vpop.f32.mrf.mxu0
  %960 = vmatprep.mubr.f32.mxu0 0.0
  %961 = vmatmul.mubr.f32.gmra.mxu0 %v725
  %v962 = vpop.f32.mrf.mxu0
  %v963 = vadd.f32 %v749, %v962
  %v964 = vpop.f32.mrf.mxu0
  %965 = vmatprep.mubr.f32.mxu0 0.0
  %966 = vmatmul.mubr.f32.gmra.mxu0 %v726
  %v967 = vpop.f32.mrf.mxu0
  %v968 = vadd.f32 %v749, %v967
  %v969 = vpop.f32.mrf.mxu0
  %970 = vmatprep.mubr.f32.mxu0 0.0
  %971 = vmatmul.mubr.f32.gmra.mxu0 %v727
  %v972 = vpop.f32.mrf.mxu0
  %v973 = vadd.f32 %v749, %v972
  %v974 = vpop.f32.mrf.mxu0
  %975 = vdwg.mxu0
  %v976 = vld [vmem:[%s2] sm:$0xff]
  %v977 = vld [vmem:[%s2 + $0x8] sm:$0xff]
  %v978 = vlaneseq
  %v979 = vshrl.u32 %v978, 7
  %v980 = vsub.s32 0, %v979
  %v981 = vrot.slane %v976, %v980
  %983 = vbcast.lane.b32.xlu0 %v981, 256
  %v984 = vpop.permute.xlu0 %983
  %s986 = sor.u32 256, 8
  %987 = vbcast.lane.b32.xlu0 %v981, %s986
  %v988 = vpop.permute.xlu0 %987
  %v989 = vlaneseq
  %v990 = vshrl.u32 %v989, 7
  %v991 = vsub.s32 1, %v990
  %v992 = vrot.slane %v976, %v991
  %994 = vbcast.lane.b32.xlu0 %v992, 256
  %v995 = vpop.permute.xlu0 %994
  %s997 = sor.u32 256, 8
  %998 = vbcast.lane.b32.xlu0 %v992, %s997
  %v999 = vpop.permute.xlu0 %998
  %v1000 = vlaneseq
  %v1001 = vshrl.u32 %v1000, 7
  %v1002 = vsub.s32 2, %v1001
  %v1003 = vrot.slane %v976, %v1002
  %1005 = vbcast.lane.b32.xlu0 %v1003, 256
  %v1006 = vpop.permute.xlu0 %1005
  %s1008 = sor.u32 256, 8
  %1009 = vbcast.lane.b32.xlu0 %v1003, %s1008
  %v1010 = vpop.permute.xlu0 %1009
  %v1011 = vlaneseq
  %v1012 = vshrl.u32 %v1011, 7
  %v1013 = vsub.s32 3, %v1012
  %v1014 = vrot.slane %v976, %v1013
  %1016 = vbcast.lane.b32.xlu0 %v1014, 256
  %v1017 = vpop.permute.xlu0 %1016
  %s1019 = sor.u32 256, 8
  %1020 = vbcast.lane.b32.xlu0 %v1014, %s1019
  %v1021 = vpop.permute.xlu0 %1020
  %v1022 = vlaneseq
  %v1023 = vshrl.u32 %v1022, 7
  %v1024 = vsub.s32 4, %v1023
  %v1025 = vrot.slane %v976, %v1024
  %1027 = vbcast.lane.b32.xlu0 %v1025, 256
  %v1028 = vpop.permute.xlu0 %1027
  %s1030 = sor.u32 256, 8
  %1031 = vbcast.lane.b32.xlu0 %v1025, %s1030
  %v1032 = vpop.permute.xlu0 %1031
  %v1033 = vlaneseq
  %v1034 = vshrl.u32 %v1033, 7
  %v1035 = vsub.s32 5, %v1034
  %v1036 = vrot.slane %v976, %v1035
  %1038 = vbcast.lane.b32.xlu0 %v1036, 256
  %v1039 = vpop.permute.xlu0 %1038
  %s1041 = sor.u32 256, 8
  %1042 = vbcast.lane.b32.xlu0 %v1036, %s1041
  %v1043 = vpop.permute.xlu0 %1042
  %v1044 = vlaneseq
  %v1045 = vshrl.u32 %v1044, 7
  %v1046 = vsub.s32 6, %v1045
  %v1047 = vrot.slane %v976, %v1046
  %1049 = vbcast.lane.b32.xlu0 %v1047, 256
  %v1050 = vpop.permute.xlu0 %1049
  %s1052 = sor.u32 256, 8
  %1053 = vbcast.lane.b32.xlu0 %v1047, %s1052
  %v1054 = vpop.permute.xlu0 %1053
  %v1055 = vlaneseq
  %v1056 = vshrl.u32 %v1055, 7
  %v1057 = vsub.s32 7, %v1056
  %v1058 = vrot.slane %v976, %v1057
  %1060 = vbcast.lane.b32.xlu0 %v1058, 256
  %v1061 = vpop.permute.xlu0 %1060
  %s1063 = sor.u32 256, 8
  %1064 = vbcast.lane.b32.xlu0 %v1058, %s1063
  %v1065 = vpop.permute.xlu0 %1064
  %v1066 = vlaneseq
  %v1067 = vshrl.u32 %v1066, 7
  %v1068 = vsub.s32 0, %v1067
  %v1069 = vrot.slane %v977, %v1068
  %1071 = vbcast.lane.b32.xlu0 %v1069, 256
  %v1072 = vpop.permute.xlu0 %1071
  %s1074 = sor.u32 256, 8
  %1075 = vbcast.lane.b32.xlu0 %v1069, %s1074
  %v1076 = vpop.permute.xlu0 %1075
  %v1077 = vlaneseq
  %v1078 = vshrl.u32 %v1077, 7
  %v1079 = vsub.s32 1, %v1078
  %v1080 = vrot.slane %v977, %v1079
  %1082 = vbcast.lane.b32.xlu0 %v1080, 256
  %v1083 = vpop.permute.xlu0 %1082
  %s1085 = sor.u32 256, 8
  %1086 = vbcast.lane.b32.xlu0 %v1080, %s1085
  %v1087 = vpop.permute.xlu0 %1086
  %v1088 = vlaneseq
  %v1089 = vshrl.u32 %v1088, 7
  %v1090 = vsub.s32 2, %v1089
  %v1091 = vrot.slane %v977, %v1090
  %1093 = vbcast.lane.b32.xlu0 %v1091, 256
  %v1094 = vpop.permute.xlu0 %1093
  %s1096 = sor.u32 256, 8
  %1097 = vbcast.lane.b32.xlu0 %v1091, %s1096
  %v1098 = vpop.permute.xlu0 %1097
  %v1099 = vlaneseq
  %v1100 = vshrl.u32 %v1099, 7
  %v1101 = vsub.s32 3, %v1100
  %v1102 = vrot.slane %v977, %v1101
  %1104 = vbcast.lane.b32.xlu0 %v1102, 256
  %v1105 = vpop.permute.xlu0 %1104
  %s1107 = sor.u32 256, 8
  %1108 = vbcast.lane.b32.xlu0 %v1102, %s1107
  %v1109 = vpop.permute.xlu0 %1108
  %v1110 = vlaneseq
  %v1111 = vshrl.u32 %v1110, 7
  %v1112 = vsub.s32 4, %v1111
  %v1113 = vrot.slane %v977, %v1112
  %1115 = vbcast.lane.b32.xlu0 %v1113, 256
  %v1116 = vpop.permute.xlu0 %1115
  %s1118 = sor.u32 256, 8
  %1119 = vbcast.lane.b32.xlu0 %v1113, %s1118
  %v1120 = vpop.permute.xlu0 %1119
  %v1121 = vlaneseq
  %v1122 = vshrl.u32 %v1121, 7
  %v1123 = vsub.s32 5, %v1122
  %v1124 = vrot.slane %v977, %v1123
  %1126 = vbcast.lane.b32.xlu0 %v1124, 256
  %v1127 = vpop.permute.xlu0 %1126
  %s1129 = sor.u32 256, 8
  %1130 = vbcast.lane.b32.xlu0 %v1124, %s1129
  %v1131 = vpop.permute.xlu0 %1130
  %v1132 = vlaneseq
  %v1133 = vshrl.u32 %v1132, 7
  %v1134 = vsub.s32 6, %v1133
  %v1135 = vrot.slane %v977, %v1134
  %1137 = vbcast.lane.b32.xlu0 %v1135, 256
  %v1138 = vpop.permute.xlu0 %1137
  %s1140 = sor.u32 256, 8
  %1141 = vbcast.lane.b32.xlu0 %v1135, %s1140
  %v1142 = vpop.permute.xlu0 %1141
  %v1143 = vlaneseq
  %v1144 = vshrl.u32 %v1143, 7
  %v1145 = vsub.s32 7, %v1144
  %v1146 = vrot.slane %v977, %v1145
  %1148 = vbcast.lane.b32.xlu0 %v1146, 256
  %v1149 = vpop.permute.xlu0 %1148
  %s1151 = sor.u32 256, 8
  %1152 = vbcast.lane.b32.xlu0 %v1146, %s1151
  %v1153 = vpop.permute.xlu0 %1152
  %v1154 = vmul.f32 %v818, %v984
  %v1155 = vmul.f32 %v823, %v988
  %v1156 = vmul.f32 %v828, %v995
  %v1157 = vmul.f32 %v833, %v999
  %v1158 = vmul.f32 %v838, %v1006
  %v1159 = vmul.f32 %v843, %v1010
  %v1160 = vmul.f32 %v848, %v1017
  %v1161 = vmul.f32 %v853, %v1021
  %v1162 = vmul.f32 %v858, %v1028
  %v1163 = vmul.f32 %v863, %v1032
  %v1164 = vmul.f32 %v868, %v1039
  %v1165 = vmul.f32 %v873, %v1043
  %v1166 = vmul.f32 %v878, %v1050
  %v1167 = vmul.f32 %v883, %v1054
  %v1168 = vmul.f32 %v888, %v1061
  %v1169 = vmul.f32 %v893, %v1065
  %v1170 = vmul.f32 %v898, %v1072
  %v1171 = vmul.f32 %v903, %v1076
  %v1172 = vmul.f32 %v908, %v1083
  %v1173 = vmul.f32 %v913, %v1087
  %v1174 = vmul.f32 %v918, %v1094
  %v1175 = vmul.f32 %v923, %v1098
  %v1176 = vmul.f32 %v928, %v1105
  %v1177 = vmul.f32 %v933, %v1109
  %v1178 = vmul.f32 %v938, %v1116
  %v1179 = vmul.f32 %v943, %v1120
  %v1180 = vmul.f32 %v948, %v1127
  %v1181 = vmul.f32 %v953, %v1131
  %v1182 = vmul.f32 %v958, %v1138
  %v1183 = vmul.f32 %v963, %v1142
  %v1184 = vmul.f32 %v968, %v1149
  %v1185 = vmul.f32 %v973, %v1153
  %v1186 = vld [vmem:[#allocation2] sm:$0xff]
  %v1187 = vld [vmem:[#allocation2 + $0x8] sm:$0xff]
  %v1188 = vld [vmem:[%s3] sm:$0xff]
  %v1189 = vld [vmem:[%s3 + $0x8] sm:$0xff]
  %v1190 = vmul.f32 %v1154, %v1188
  %v1191 = vmul.f32 %v1155, %v1189
  %v1192 = vmul.f32 %v1156, %v1188
  %v1193 = vmul.f32 %v1157, %v1189
  %v1194 = vmul.f32 %v1158, %v1188
  %v1195 = vmul.f32 %v1159, %v1189
  %v1196 = vmul.f32 %v1160, %v1188
  %v1197 = vmul.f32 %v1161, %v1189
  %v1198 = vmul.f32 %v1162, %v1188
  %v1199 = vmul.f32 %v1163, %v1189
  %v1200 = vmul.f32 %v1164, %v1188
  %v1201 = vmul.f32 %v1165, %v1189
  %v1202 = vmul.f32 %v1166, %v1188
  %v1203 = vmul.f32 %v1167, %v1189
  %v1204 = vmul.f32 %v1168, %v1188
  %v1205 = vmul.f32 %v1169, %v1189
  %v1206 = vmul.f32 %v1170, %v1188
  %v1207 = vmul.f32 %v1171, %v1189
  %v1208 = vmul.f32 %v1172, %v1188
  %v1209 = vmul.f32 %v1173, %v1189
  %v1210 = vmul.f32 %v1174, %v1188
  %v1211 = vmul.f32 %v1175, %v1189
  %v1212 = vmul.f32 %v1176, %v1188
  %v1213 = vmul.f32 %v1177, %v1189
  %v1214 = vmul.f32 %v1178, %v1188
  %v1215 = vmul.f32 %v1179, %v1189
  %v1216 = vmul.f32 %v1180, %v1188
  %v1217 = vmul.f32 %v1181, %v1189
  %v1218 = vmul.f32 %v1182, %v1188
  %v1219 = vmul.f32 %v1183, %v1189
  %v1220 = vmul.f32 %v1184, %v1188
  %v1221 = vmul.f32 %v1185, %v1189
  %v1222 = vadd.f32 %v1190, %v1191
  %v1223 = vrot.slane %v1222, 4
  %v1224 = vadd.f32 %v1222, %v1223
  %v1225 = vrot.slane %v1224, 2
  %v1226 = vadd.f32 %v1224, %v1225
  %v1227 = vrot.slane %v1226, 1
  %v1228 = vadd.f32 %v1226, %v1227
  %v1229 = vadd.f32 %v1192, %v1193
  %v1230 = vrot.slane %v1229, 4
  %v1231 = vadd.f32 %v1229, %v1230
  %v1232 = vrot.slane %v1231, 2
  %v1233 = vadd.f32 %v1231, %v1232
  %v1234 = vrot.slane %v1233, 1
  %v1235 = vadd.f32 %v1233, %v1234
  %v1236 = vadd.f32 %v1194, %v1195
  %v1237 = vrot.slane %v1236, 4
  %v1238 = vadd.f32 %v1236, %v1237
  %v1239 = vrot.slane %v1238, 2
  %v1240 = vadd.f32 %v1238, %v1239
  %v1241 = vrot.slane %v1240, 1
  %v1242 = vadd.f32 %v1240, %v1241
  %v1243 = vadd.f32 %v1196, %v1197
  %v1244 = vrot.slane %v1243, 4
  %v1245 = vadd.f32 %v1243, %v1244
  %v1246 = vrot.slane %v1245, 2
  %v1247 = vadd.f32 %v1245, %v1246
  %v1248 = vrot.slane %v1247, 1
  %v1249 = vadd.f32 %v1247, %v1248
  %v1250 = vadd.f32 %v1198, %v1199
  %v1251 = vrot.slane %v1250, 4
  %v1252 = vadd.f32 %v1250, %v1251
  %v1253 = vrot.slane %v1252, 2
  %v1254 = vadd.f32 %v1252, %v1253
  %v1255 = vrot.slane %v1254, 1
  %v1256 = vadd.f32 %v1254, %v1255
  %v1257 = vadd.f32 %v1200, %v1201
  %v1258 = vrot.slane %v1257, 4
  %v1259 = vadd.f32 %v1257, %v1258
  %v1260 = vrot.slane %v1259, 2
  %v1261 = vadd.f32 %v1259, %v1260
  %v1262 = vrot.slane %v1261, 1
  %v1263 = vadd.f32 %v1261, %v1262
  %v1264 = vadd.f32 %v1202, %v1203
  %v1265 = vrot.slane %v1264, 4
  %v1266 = vadd.f32 %v1264, %v1265
  %v1267 = vrot.slane %v1266, 2
  %v1268 = vadd.f32 %v1266, %v1267
  %v1269 = vrot.slane %v1268, 1
  %v1270 = vadd.f32 %v1268, %v1269
  %v1271 = vadd.f32 %v1204, %v1205
  %v1272 = vrot.slane %v1271, 4
  %v1273 = vadd.f32 %v1271, %v1272
  %v1274 = vrot.slane %v1273, 2
  %v1275 = vadd.f32 %v1273, %v1274
  %v1276 = vrot.slane %v1275, 1
  %v1277 = vadd.f32 %v1275, %v1276
  %v1278 = vadd.f32 %v1206, %v1207
  %v1279 = vrot.slane %v1278, 4
  %v1280 = vadd.f32 %v1278, %v1279
  %v1281 = vrot.slane %v1280, 2
  %v1282 = vadd.f32 %v1280, %v1281
  %v1283 = vrot.slane %v1282, 1
  %v1284 = vadd.f32 %v1282, %v1283
  %v1285 = vadd.f32 %v1208, %v1209
  %v1286 = vrot.slane %v1285, 4
  %v1287 = vadd.f32 %v1285, %v1286
  %v1288 = vrot.slane %v1287, 2
  %v1289 = vadd.f32 %v1287, %v1288
  %v1290 = vrot.slane %v1289, 1
  %v1291 = vadd.f32 %v1289, %v1290
  %v1292 = vadd.f32 %v1210, %v1211
  %v1293 = vrot.slane %v1292, 4
  %v1294 = vadd.f32 %v1292, %v1293
  %v1295 = vrot.slane %v1294, 2
  %v1296 = vadd.f32 %v1294, %v1295
  %v1297 = vrot.slane %v1296, 1
  %v1298 = vadd.f32 %v1296, %v1297
  %v1299 = vadd.f32 %v1212, %v1213
  %v1300 = vrot.slane %v1299, 4
  %v1301 = vadd.f32 %v1299, %v1300
  %v1302 = vrot.slane %v1301, 2
  %v1303 = vadd.f32 %v1301, %v1302
  %v1304 = vrot.slane %v1303, 1
  %v1305 = vadd.f32 %v1303, %v1304
  %v1306 = vadd.f32 %v1214, %v1215
  %v1307 = vrot.slane %v1306, 4
  %v1308 = vadd.f32 %v1306, %v1307
  %v1309 = vrot.slane %v1308, 2
  %v1310 = vadd.f32 %v1308, %v1309
  %v1311 = vrot.slane %v1310, 1
  %v1312 = vadd.f32 %v1310, %v1311
  %v1313 = vadd.f32 %v1216, %v1217
  %v1314 = vrot.slane %v1313, 4
  %v1315 = vadd.f32 %v1313, %v1314
  %v1316 = vrot.slane %v1315, 2
  %v1317 = vadd.f32 %v1315, %v1316
  %v1318 = vrot.slane %v1317, 1
  %v1319 = vadd.f32 %v1317, %v1318
  %v1320 = vadd.f32 %v1218, %v1219
  %v1321 = vrot.slane %v1320, 4
  %v1322 = vadd.f32 %v1320, %v1321
  %v1323 = vrot.slane %v1322, 2
  %v1324 = vadd.f32 %v1322, %v1323
  %v1325 = vrot.slane %v1324, 1
  %v1326 = vadd.f32 %v1324, %v1325
  %v1327 = vadd.f32 %v1220, %v1221
  %v1328 = vrot.slane %v1327, 4
  %v1329 = vadd.f32 %v1327, %v1328
  %v1330 = vrot.slane %v1329, 2
  %v1331 = vadd.f32 %v1329, %v1330
  %v1332 = vrot.slane %v1331, 1
  %v1333 = vadd.f32 %v1331, %v1332
  %vm1350 = vcmask 1041409
  %v1351 = vsel %vm1350, %v1235, %v1228
  %vm1352 = vcmask 1042434
  %v1353 = vsel %vm1352, %v1242, %v1351
  %vm1354 = vcmask 1043459
  %v1355 = vsel %vm1354, %v1249, %v1353
  %vm1356 = vcmask 1044484
  %v1357 = vsel %vm1356, %v1256, %v1355
  %vm1358 = vcmask 1045509
  %v1359 = vsel %vm1358, %v1263, %v1357
  %vm1360 = vcmask 1046534
  %v1361 = vsel %vm1360, %v1270, %v1359
  %vm1362 = vcmask 1047559
  %v1363 = vsel %vm1362, %v1277, %v1361
  %v1364 = vsel %vm1350, %v1291, %v1284
  %v1365 = vsel %vm1352, %v1298, %v1364
  %v1366 = vsel %vm1354, %v1305, %v1365
  %v1367 = vsel %vm1356, %v1312, %v1366
  %v1368 = vsel %vm1358, %v1319, %v1367
  %v1369 = vsel %vm1360, %v1326, %v1368
  %v1370 = vsel %vm1362, %v1333, %v1369
  %v1373 = vadd.f32 %v1186, %v1363
  %v1374 = vadd.f32 %v1187, %v1370
  %1375 = vst [vmem:[#allocation2] sm:$0xff] %v1373
  %1376 = vst [vmem:[#allocation2 + $0x8] sm:$0xff] %v1374
  // Predicated region
  $region54: #{schnet_forward.10} parent=0 // pred_check
    %p1377 = pneg %p42
  $region55: #{schnet_forward.10} parent=0 // pred_check_branch
    %1379 = sbr.rel (%p1377) target = $region57
  $region56: #{schnet_forward.10} parent=0 // pred_region
    %v1380 = vld [vmem:[#allocation2] sm:$0xff]
    %v1381 = vld [vmem:[#allocation2 + $0x8] sm:$0xff]
    %v1382 = vld [vmem:[%s8] sm:$0xff]
    %v1383 = vld [vmem:[%s8 + $0x8] sm:$0xff]
    %v1384 = vld [vmem:[%s8 + $0x10] sm:$0xff]
    %v1385 = vld [vmem:[%s8 + $0x18] sm:$0xff]
    %v1386 = vld [vmem:[%s8 + $0x20] sm:$0xff]
    %v1387 = vld [vmem:[%s8 + $0x28] sm:$0xff]
    %v1388 = vld [vmem:[%s8 + $0x30] sm:$0xff]
    %v1389 = vld [vmem:[%s8 + $0x38] sm:$0xff]
    %v1390 = vld [vmem:[%s8 + $0x40] sm:$0xff]
    %v1391 = vld [vmem:[%s8 + $0x48] sm:$0xff]
    %v1392 = vld [vmem:[%s8 + $0x50] sm:$0xff]
    %v1393 = vld [vmem:[%s8 + $0x58] sm:$0xff]
    %v1394 = vld [vmem:[%s8 + $0x60] sm:$0xff]
    %v1395 = vld [vmem:[%s8 + $0x68] sm:$0xff]
    %v1396 = vld [vmem:[%s8 + $0x70] sm:$0xff]
    %v1397 = vld [vmem:[%s8 + $0x78] sm:$0xff]
    %v1398 = vld [vmem:[%s9] sm:$0x1]
    %v1400 = vlaneseq
    %v1401 = vshrl.u32 %v1400, 7
    %v1402 = vsub.s32 0, %v1401
    %v1403 = vrot.slane %v1398, %v1402
    %1405 = vmatprep.subr.mxu0 0.0
    %1406 = vmatpush1.msra.mxu0 %v1397
    %1407 = vmatprep.subr.mxu0 0.0
    %1408 = vmatpush1.msra.mxu0 %v1396
    %1409 = vmatprep.subr.mxu0 0.0
    %1410 = vmatpush1.msra.mxu0 %v1395
    %1411 = vmatprep.subr.mxu0 0.0
    %1412 = vmatpush1.msra.mxu0 %v1394
    %1413 = vmatprep.subr.mxu0 0.0
    %1414 = vmatpush1.msra.mxu0 %v1393
    %1415 = vmatprep.subr.mxu0 0.0
    %1416 = vmatpush1.msra.mxu0 %v1392
    %1417 = vmatprep.subr.mxu0 0.0
    %1418 = vmatpush1.msra.mxu0 %v1391
    %1419 = vmatprep.subr.mxu0 0.0
    %1420 = vmatpush1.msra.mxu0 %v1390
    %1421 = vmatprep.subr.mxu0 0.0
    %1422 = vmatpush1.msra.mxu0 %v1389
    %1423 = vmatprep.subr.mxu0 0.0
    %1424 = vmatpush1.msra.mxu0 %v1388
    %1425 = vmatprep.subr.mxu0 0.0
    %1426 = vmatpush1.msra.mxu0 %v1387
    %1427 = vmatprep.subr.mxu0 0.0
    %1428 = vmatpush1.msra.mxu0 %v1386
    %1429 = vmatprep.subr.mxu0 0.0
    %1430 = vmatpush1.msra.mxu0 %v1385
    %1431 = vmatprep.subr.mxu0 0.0
    %1432 = vmatpush1.msra.mxu0 %v1384
    %1433 = vmatprep.subr.mxu0 0.0
    %1434 = vmatpush1.msra.mxu0 %v1383
    %1435 = vmatprep.subr.mxu0 0.0
    %1436 = vmatpush1.msra.mxu0 %v1382
    %1437 = vmatprep.subr.mxu0 0.0
    %1438 = vmatpush2.msra.mxu0 0.0
    %1439 = vmatprep.subr.mxu0 0.0
    %1440 = vmatpush2.msra.mxu0 0.0
    %1441 = vmatprep.subr.mxu0 0.0
    %1442 = vmatpush2.msra.mxu0 0.0
    %1443 = vmatprep.subr.mxu0 0.0
    %1444 = vmatpush2.msra.mxu0 0.0
    %1445 = vmatprep.subr.mxu0 0.0
    %1446 = vmatpush2.msra.mxu0 0.0
    %1447 = vmatprep.subr.mxu0 0.0
    %1448 = vmatpush2.msra.mxu0 0.0
    %1449 = vmatprep.subr.mxu0 0.0
    %1450 = vmatpush2.msra.mxu0 0.0
    %1451 = vmatprep.subr.mxu0 0.0
    %1452 = vmatpush2.msra.mxu0 0.0
    %1453 = vmatprep.subr.mxu0 0.0
    %1454 = vmatpush2.msra.mxu0 0.0
    %1455 = vmatprep.subr.mxu0 0.0
    %1456 = vmatpush2.msra.mxu0 0.0
    %1457 = vmatprep.subr.mxu0 0.0
    %1458 = vmatpush2.msra.mxu0 0.0
    %1459 = vmatprep.subr.mxu0 0.0
    %1460 = vmatpush2.msra.mxu0 0.0
    %1461 = vmatprep.subr.mxu0 0.0
    %1462 = vmatpush2.msra.mxu0 0.0
    %1463 = vmatprep.subr.mxu0 0.0
    %1464 = vmatpush2.msra.mxu0 0.0
    %1465 = vmatprep.subr.mxu0 0.0
    %1466 = vmatpush2.msra.mxu0 0.0
    %1467 = vmatprep.subr.mxu0 0.0
    %1468 = vmatpush2.msra.mxu0 0.0
    %1469 = vmatprep.mubr.f32.mxu0 0.0
    %1470 = vmatmul.mubr.f32.gmra.mxu0 %v1380
    %v1471 = vpop.f32.mrf.mxu0
    %v1472 = vadd.f32 %v1403, %v1471
    %v1473 = vpop.f32.mrf.mxu0
    %1474 = vmatprep.mubr.f32.mxu0 0.0
    %1475 = vmatmul.mubr.f32.gmra.mxu0 %v1381
    %v1476 = vpop.f32.mrf.mxu0
    %v1477 = vadd.f32 %v1403, %v1476
    %v1478 = vpop.f32.mrf.mxu0
    %1479 = vdwg.mxu0
    %v1480 = vmax.f32 %v1472, 0.0
    %v1481 = vmax.f32 %v1477, 0.0
    %v1482 = vand.u32 2147483647, %v1472
    %v1483 = vand.u32 2147483647, %v1477
    %v1484 = vsub.f32 0.0, %v1482
    %v1485 = vsub.f32 0.0, %v1483
    %v1486 = vmul.f32 %v1484, 1.442695
    %v1487 = vpow.pop %v1486
    %v1488 = vmul.f32 %v1485, 1.442695
    %v1489 = vpow.pop %v1488
    %v1490 = vadd.f32 %v1487, 1.0
    %v1491 = vadd.f32 %v1489, 1.0
    %v1492 = vlog2.pop %v1490
    %v1493 = vmul.f32 %v1492, 0.6931472
    %v1494 = vlog2.pop %v1491
    %v1495 = vmul.f32 %v1494, 0.6931472
    %v1496 = vadd.f32 %v1480, %v1493
    %v1497 = vadd.f32 %v1481, %v1495
    %v1498 = vsub.f32 %v1496, 0.6931472
    %v1499 = vsub.f32 %v1497, 0.6931472
    %v1500 = vld [vmem:[%s0] sm:$0xff]
    %v1501 = vld [vmem:[%s0 + $0x8] sm:$0xff]
    %v1502 = vld [vmem:[%s10] sm:$0xff]
    %v1503 = vld [vmem:[%s10 + $0x8] sm:$0xff]
    %v1504 = vld [vmem:[%s10 + $0x10] sm:$0xff]
    %v1505 = vld [vmem:[%s10 + $0x18] sm:$0xff]
    %v1506 = vld [vmem:[%s10 + $0x20] sm:$0xff]
    %v1507 = vld [vmem:[%s10 + $0x28] sm:$0xff]
    %v1508 = vld [vmem:[%s10 + $0x30] sm:$0xff]
    %v1509 = vld [vmem:[%s10 + $0x38] sm:$0xff]
    %v1510 = vld [vmem:[%s10 + $0x40] sm:$0xff]
    %v1511 = vld [vmem:[%s10 + $0x48] sm:$0xff]
    %v1512 = vld [vmem:[%s10 + $0x50] sm:$0xff]
    %v1513 = vld [vmem:[%s10 + $0x58] sm:$0xff]
    %v1514 = vld [vmem:[%s10 + $0x60] sm:$0xff]
    %v1515 = vld [vmem:[%s10 + $0x68] sm:$0xff]
    %v1516 = vld [vmem:[%s10 + $0x70] sm:$0xff]
    %v1517 = vld [vmem:[%s10 + $0x78] sm:$0xff]
    %1518 = vmatprep.subr.mxu0 0.0
    %1519 = vmatpush1.msra.mxu0 %v1517
    %1520 = vmatprep.subr.mxu0 0.0
    %1521 = vmatpush1.msra.mxu0 %v1516
    %1522 = vmatprep.subr.mxu0 0.0
    %1523 = vmatpush1.msra.mxu0 %v1515
    %1524 = vmatprep.subr.mxu0 0.0
    %1525 = vmatpush1.msra.mxu0 %v1514
    %1526 = vmatprep.subr.mxu0 0.0
    %1527 = vmatpush1.msra.mxu0 %v1513
    %1528 = vmatprep.subr.mxu0 0.0
    %1529 = vmatpush1.msra.mxu0 %v1512
    %1530 = vmatprep.subr.mxu0 0.0
    %1531 = vmatpush1.msra.mxu0 %v1511
    %1532 = vmatprep.subr.mxu0 0.0
    %1533 = vmatpush1.msra.mxu0 %v1510
    %1534 = vmatprep.subr.mxu0 0.0
    %1535 = vmatpush1.msra.mxu0 %v1509
    %1536 = vmatprep.subr.mxu0 0.0
    %1537 = vmatpush1.msra.mxu0 %v1508
    %1538 = vmatprep.subr.mxu0 0.0
    %1539 = vmatpush1.msra.mxu0 %v1507
    %1540 = vmatprep.subr.mxu0 0.0
    %1541 = vmatpush1.msra.mxu0 %v1506
    %1542 = vmatprep.subr.mxu0 0.0
    %1543 = vmatpush1.msra.mxu0 %v1505
    %1544 = vmatprep.subr.mxu0 0.0
    %1545 = vmatpush1.msra.mxu0 %v1504
    %1546 = vmatprep.subr.mxu0 0.0
    %1547 = vmatpush1.msra.mxu0 %v1503
    %1548 = vmatprep.subr.mxu0 0.0
    %1549 = vmatpush1.msra.mxu0 %v1502
    %1550 = vmatprep.subr.mxu0 0.0
    %1551 = vmatpush2.msra.mxu0 0.0
    %1552 = vmatprep.subr.mxu0 0.0
    %1553 = vmatpush2.msra.mxu0 0.0
    %1554 = vmatprep.subr.mxu0 0.0
    %1555 = vmatpush2.msra.mxu0 0.0
    %1556 = vmatprep.subr.mxu0 0.0
    %1557 = vmatpush2.msra.mxu0 0.0
    %1558 = vmatprep.subr.mxu0 0.0
    %1559 = vmatpush2.msra.mxu0 0.0
    %1560 = vmatprep.subr.mxu0 0.0
    %1561 = vmatpush2.msra.mxu0 0.0
    %1562 = vmatprep.subr.mxu0 0.0
    %1563 = vmatpush2.msra.mxu0 0.0
    %1564 = vmatprep.subr.mxu0 0.0
    %1565 = vmatpush2.msra.mxu0 0.0
    %1566 = vmatprep.subr.mxu0 0.0
    %1567 = vmatpush2.msra.mxu0 0.0
    %1568 = vmatprep.subr.mxu0 0.0
    %1569 = vmatpush2.msra.mxu0 0.0
    %1570 = vmatprep.subr.mxu0 0.0
    %1571 = vmatpush2.msra.mxu0 0.0
    %1572 = vmatprep.subr.mxu0 0.0
    %1573 = vmatpush2.msra.mxu0 0.0
    %1574 = vmatprep.subr.mxu0 0.0
    %1575 = vmatpush2.msra.mxu0 0.0
    %1576 = vmatprep.subr.mxu0 0.0
    %1577 = vmatpush2.msra.mxu0 0.0
    %1578 = vmatprep.subr.mxu0 0.0
    %1579 = vmatpush2.msra.mxu0 0.0
    %1580 = vmatprep.subr.mxu0 0.0
    %1581 = vmatpush2.msra.mxu0 0.0
    %1582 = vmatprep.mubr.f32.mxu0 0.0
    %1583 = vmatmul.mubr.f32.gmra.mxu0 %v1498
    %v1584 = vpop.f32.mrf.mxu0
    %v1585 = vadd.f32 0.0, %v1584
    %v1586 = vpop.f32.mrf.mxu0
    %1587 = vmatprep.mubr.f32.mxu0 0.0
    %1588 = vmatmul.mubr.f32.gmra.mxu0 %v1499
    %v1589 = vpop.f32.mrf.mxu0
    %v1590 = vadd.f32 0.0, %v1589
    %v1591 = vpop.f32.mrf.mxu0
    %1592 = vdwg.mxu0
    %v1593 = vadd.f32 %v1500, %v1585
    %v1594 = vadd.f32 %v1501, %v1590
    %v1595 = vld [vmem:[%s11] sm:$0x1]
    %v1597 = vlaneseq
    %v1598 = vshrl.u32 %v1597, 7
    %v1599 = vsub.s32 0, %v1598
    %v1600 = vrot.slane %v1595, %v1599
    %v1602 = vadd.f32 %v1593, %v1600
    %v1603 = vadd.f32 %v1594, %v1600
    %1604 = vst [vmem:[%s12] sm:$0xff] %v1602
    %1605 = vst [vmem:[%s12 + $0x8] sm:$0xff] %v1603
  $region57: #{schnet_forward.10} parent=0 // pred_fallthru
    _
  // Predicated region
  $region58: #{schnet_forward.10} parent=0 // pred_check
    _
  $region59: #{schnet_forward.10} parent=0 // pred_check_branch
    %1607 = sbr.rel (0) target = $region61
  $region60: #{schnet_forward.10} parent=0 // pred_region
    _
  $region61: #{schnet_forward.10} parent=0 // pred_fallthru
    _
  // Predicated region
  $region62: #{schnet_forward.10} parent=0 // pred_check
    _
  $region63: #{schnet_forward.10} parent=0 // pred_check_branch
    %1609 = sbr.rel (0) target = $region65
  $region64: #{schnet_forward.10} parent=0 // pred_region
    _
  $region65: #{schnet_forward.10} parent=0 // pred_fallthru
    _

</llo_original>
